<compile_context>
chip_gen: v5e
topology: v5e:2x2
jax: 0.10.0
libtpu: 0.0.40
codegen_flags: <defaults>
</compile_context>

<pallas_src>
import jax
import jax.numpy as jnp
from jax.experimental import pallas as pl
from jax.experimental.pallas import tpu as pltpu


def bnn_kernel(x_ref,
               w1_ref, b1_ref, w2_ref, b2_ref,
               wh_ref, bh_ref, wo_ref, bo_ref,
               out_ref):
    x = x_ref[...]                                            # (tb, 6) f32

    # emb_layer: Linear(6,128) -> ReLU -> Linear(128,128) -> ReLU
    h = jnp.dot(x, w1_ref[...], preferred_element_type=jnp.float32) + b1_ref[...]
    h = jnp.maximum(h, 0.0)
    h = jnp.dot(h, w2_ref[...], preferred_element_type=jnp.float32) + b2_ref[...]
    h = jnp.maximum(h, 0.0)                                   # (tb, 128)

    # Fused heads: one (tb,128)@(128,64) dot covers mean- and std-hidden.
    g = jnp.dot(h, wh_ref[...], preferred_element_type=jnp.float32) + bh_ref[...]
    g = jnp.maximum(g, 0.0)                                   # (tb, 64)

    # Block-diagonal final projection: column 0 = mean, column 1 = std (pre-softplus).
    o = jnp.dot(g, wo_ref[...], preferred_element_type=jnp.float32) + bo_ref[...]  # (tb, 2)

    # softplus(x) = max(x,0) + log1p(exp(-|x|))  (numerically stable), applied
    # only to the std column via a lane select.
    sp = jnp.maximum(o, 0.0) + jnp.log1p(jnp.exp(-jnp.abs(o)))
    col = jax.lax.broadcasted_iota(jnp.int32, o.shape, dimension=1)
    out_ref[...] = jnp.where(col == 0, o, sp)


def bnn_forward(x, params, *, tb=256):
    """x: (B, 6) float32.  Returns (mean, std), each (B, 1) float32."""
    B, F = x.shape
    assert F == 6

    (w1, b1, w2, b2, wm1, bm1, wm2, bm2, ws1, bs1, ws2, bs2) = params

    # ---- head fusion (cheap, done outside the kernel) ----
    wh = jnp.concatenate([wm1, ws1], axis=1)                  # (128, 64)
    bh = jnp.concatenate([bm1, bs1], axis=1)                  # (1, 64)
    z = jnp.zeros_like(wm2)                                   # (32, 1)
    wo = jnp.concatenate(
        [jnp.concatenate([wm2, z], axis=1),
         jnp.concatenate([z, ws2], axis=1)], axis=0)          # (64, 2) block-diagonal
    bo = jnp.concatenate([bm2, bs2], axis=1)                  # (1, 2)

    # ---- batch tiling: pad B up to a multiple of the (8-aligned) tile ----
    ceil8 = -(-B // 8) * 8
    tb_eff = min(tb, ceil8)
    tb_eff = -(-tb_eff // 8) * 8
    Bp = -(-B // tb_eff) * tb_eff
    xp = x if Bp == B else jnp.pad(x, ((0, Bp - B), (0, 0)))

    def full_spec(shape):
        # Grid-invariant weights/biases: constant index_map -> block stays
        # resident in VMEM, no re-DMA per grid step.
        return pl.BlockSpec(shape, lambda i: tuple(0 for _ in shape))

    in_specs = [
        pl.BlockSpec((tb_eff, F), lambda i: (i, 0)),          # x tile
        full_spec(w1.shape), full_spec(b1.shape),
        full_spec(w2.shape), full_spec(b2.shape),
        full_spec(wh.shape), full_spec(bh.shape),
        full_spec(wo.shape), full_spec(bo.shape),
    ]
    out_specs = pl.BlockSpec((tb_eff, 2), lambda i: (i, 0))

    out = pl.pallas_call(
        bnn_kernel,
        out_shape=jax.ShapeDtypeStruct((Bp, 2), jnp.float32),
        grid_spec=pltpu.PrefetchScalarGridSpec(
            num_scalar_prefetch=0,
            grid=(Bp // tb_eff,),
            in_specs=in_specs,
            out_specs=out_specs,
        ),
        compiler_params=pltpu.CompilerParams(
            dimension_semantics=("parallel",)),
    )(xp, w1, b1, w2, b2, wh, bh, wo, bo)

    mean = out[:B, 0:1]
    std = out[:B, 1:2]
    return mean, std


def init_params(key):
    """Deterministic init mimicking nn.Linear shapes.
    Weights stored as (in, out); biases as (1, out) for in-kernel broadcast."""
    def linear(key, fan_in, fan_out):
        kw, kb = jax.random.split(key)
        bound = 1.0 / jnp.sqrt(fan_in)
        w = jax.random.uniform(kw, (fan_in, fan_out), jnp.float32, -bound, bound)
        b = jax.random.uniform(kb, (1, fan_out), jnp.float32, -bound, bound)
        return w, b

    keys = jax.random.split(key, 6)
    w1, b1 = linear(keys[0], 6, 128)     # emb Linear(6,128)
    w2, b2 = linear(keys[1], 128, 128)   # emb Linear(128,128)
    wm1, bm1 = linear(keys[2], 128, 32)  # mean Linear(128,32)
    wm2, bm2 = linear(keys[3], 32, 1)    # mean Linear(32,1)
    ws1, bs1 = linear(keys[4], 128, 32)  # std Linear(128,32)
    ws2, bs2 = linear(keys[5], 32, 1)    # std Linear(32,1)
    return (w1, b1, w2, b2, wm1, bm1, wm2, bm2, ws1, bs1, ws2, bs2)


def bnn_reference(x, params):
    (w1, b1, w2, b2, wm1, bm1, wm2, bm2, ws1, bs1, ws2, bs2) = params
    h = jax.nn.relu(x @ w1 + b1)
    h = jax.nn.relu(h @ w2 + b2)
    m = jax.nn.relu(h @ wm1 + bm1) @ wm2 + bm2
    s = jax.nn.softplus(jax.nn.relu(h @ ws1 + bs1) @ ws2 + bs2)
    return m, s


if __name__ == "__main__":
    key = jax.random.PRNGKey(0)
    k_param, k_x = jax.random.split(key)

    params = init_params(k_param)

    # Main check: 2 grid steps of 256 rows (keeps both v7x TensorCores busy).
    B = 512
    x = jax.random.normal(k_x, (B, 6), jnp.float32)
    mean, std = bnn_forward(x, params, tb=256)
    jax.block_until_ready((mean, std))

    m_ref, s_ref = bnn_reference(x, params)
    assert jnp.allclose(mean, m_ref, atol=1e-5, rtol=1e-5)
    assert jnp.allclose(std, s_ref, atol=1e-5, rtol=1e-5)
    assert bool(jnp.all(std > 0))

    # Also exercise a batch that is not a multiple of the tile (tail padding path).
    x2 = jax.random.normal(jax.random.PRNGKey(2), (37, 6), jnp.float32)
    m2, s2 = bnn_forward(x2, params, tb=256)
    jax.block_until_ready((m2, s2))
    m2_ref, s2_ref = bnn_reference(x2, params)
    assert m2.shape == (37, 1) and s2.shape == (37, 1)
    assert jnp.allclose(m2, m2_ref, atol=1e-5, rtol=1e-5)
    assert jnp.allclose(s2, s2_ref, atol=1e-5, rtol=1e-5)

    print("KERNEL_OK")
</pallas_src>

<mosaic_0001>
module attributes {stable_mosaic.version = 11 : i64} {
  func.func @bnn_kernel(%arg0: i32, %arg1: memref<256x6xf32, #tpu.memory_space<vmem>>, %arg2: memref<6x128xf32, #tpu.memory_space<vmem>>, %arg3: memref<1x128xf32, #tpu.memory_space<vmem>>, %arg4: memref<128x128xf32, #tpu.memory_space<vmem>>, %arg5: memref<1x128xf32, #tpu.memory_space<vmem>>, %arg6: memref<128x64xf32, #tpu.memory_space<vmem>>, %arg7: memref<1x64xf32, #tpu.memory_space<vmem>>, %arg8: memref<64x2xf32, #tpu.memory_space<vmem>>, %arg9: memref<1x2xf32, #tpu.memory_space<vmem>>, %arg10: memref<256x2xf32, #tpu.memory_space<vmem>>) attributes {dimension_semantics = [#tpu.dimension_semantics<parallel>], iteration_bounds = array<i64: 2>, scalar_prefetch = 0 : i64, scratch_operands = 0 : i64, tpu.core_type = #tpu.core_type<tc>, window_params = [{transform_indices = @transform_0, window_bounds = array<i64: 256, 6>}, {pipeline_mode = #tpu.pipeline_mode<synchronous>, transform_indices = @transform_1, window_bounds = array<i64: 6, 128>}, {pipeline_mode = #tpu.pipeline_mode<synchronous>, transform_indices = @transform_2, window_bounds = array<i64: 1, 128>}, {pipeline_mode = #tpu.pipeline_mode<synchronous>, transform_indices = @transform_3, window_bounds = array<i64: 128, 128>}, {pipeline_mode = #tpu.pipeline_mode<synchronous>, transform_indices = @transform_4, window_bounds = array<i64: 1, 128>}, {pipeline_mode = #tpu.pipeline_mode<synchronous>, transform_indices = @transform_5, window_bounds = array<i64: 128, 64>}, {pipeline_mode = #tpu.pipeline_mode<synchronous>, transform_indices = @transform_6, window_bounds = array<i64: 1, 64>}, {pipeline_mode = #tpu.pipeline_mode<synchronous>, transform_indices = @transform_7, window_bounds = array<i64: 64, 2>}, {pipeline_mode = #tpu.pipeline_mode<synchronous>, transform_indices = @transform_8, window_bounds = array<i64: 1, 2>}, {transform_indices = @transform_9, window_bounds = array<i64: 256, 2>}]} {
    %c0 = arith.constant 0 : index
    %c0_0 = arith.constant 0 : index
    %0 = vector.load %arg1[%c0, %c0_0] : memref<256x6xf32, #tpu.memory_space<vmem>>, vector<256x6xf32>
    %c0_1 = arith.constant 0 : index
    %c0_2 = arith.constant 0 : index
    %1 = vector.load %arg2[%c0_1, %c0_2] : memref<6x128xf32, #tpu.memory_space<vmem>>, vector<6x128xf32>
    %cst = arith.constant dense<0.000000e+00> : vector<256x128xf32>
    %2 = tpu.matmul %0, %1, %cst {dimension_numbers = #tpu.dot_dimension_numbers<[1], [0], [0], [1], [0, 0, 1, 1], [], []>} : vector<256x6xf32>, vector<6x128xf32>, vector<256x128xf32> -> vector<256x128xf32>
    %c0_3 = arith.constant 0 : index
    %c0_4 = arith.constant 0 : index
    %3 = vector.load %arg3[%c0_3, %c0_4] : memref<1x128xf32, #tpu.memory_space<vmem>>, vector<1x128xf32>
    %4 = vector.broadcast %3 : vector<1x128xf32> to vector<256x128xf32>
    %5 = arith.addf %2, %4 : vector<256x128xf32>
    %cst_5 = arith.constant 0.000000e+00 : f32
    %6 = vector.broadcast %cst_5 : f32 to vector<256x128xf32>
    %7 = arith.maximumf %5, %6 : vector<256x128xf32>
    %c0_6 = arith.constant 0 : index
    %c0_7 = arith.constant 0 : index
    %8 = vector.load %arg4[%c0_6, %c0_7] : memref<128x128xf32, #tpu.memory_space<vmem>>, vector<128x128xf32>
    %cst_8 = arith.constant dense<0.000000e+00> : vector<256x128xf32>
    %9 = tpu.matmul %7, %8, %cst_8 {dimension_numbers = #tpu.dot_dimension_numbers<[1], [0], [0], [1], [0, 0, 1, 1], [], []>} : vector<256x128xf32>, vector<128x128xf32>, vector<256x128xf32> -> vector<256x128xf32>
    %c0_9 = arith.constant 0 : index
    %c0_10 = arith.constant 0 : index
    %10 = vector.load %arg5[%c0_9, %c0_10] : memref<1x128xf32, #tpu.memory_space<vmem>>, vector<1x128xf32>
    %11 = vector.broadcast %10 : vector<1x128xf32> to vector<256x128xf32>
    %12 = arith.addf %9, %11 : vector<256x128xf32>
    %cst_11 = arith.constant 0.000000e+00 : f32
    %13 = vector.broadcast %cst_11 : f32 to vector<256x128xf32>
    %14 = arith.maximumf %12, %13 : vector<256x128xf32>
    %c0_12 = arith.constant 0 : index
    %c0_13 = arith.constant 0 : index
    %15 = vector.load %arg6[%c0_12, %c0_13] : memref<128x64xf32, #tpu.memory_space<vmem>>, vector<128x64xf32>
    %cst_14 = arith.constant dense<0.000000e+00> : vector<256x64xf32>
    %16 = tpu.matmul %14, %15, %cst_14 {dimension_numbers = #tpu.dot_dimension_numbers<[1], [0], [0], [1], [0, 0, 1, 1], [], []>} : vector<256x128xf32>, vector<128x64xf32>, vector<256x64xf32> -> vector<256x64xf32>
    %c0_15 = arith.constant 0 : index
    %c0_16 = arith.constant 0 : index
    %17 = vector.load %arg7[%c0_15, %c0_16] : memref<1x64xf32, #tpu.memory_space<vmem>>, vector<1x64xf32>
    %18 = vector.broadcast %17 : vector<1x64xf32> to vector<256x64xf32>
    %19 = arith.addf %16, %18 : vector<256x64xf32>
    %cst_17 = arith.constant 0.000000e+00 : f32
    %20 = vector.broadcast %cst_17 : f32 to vector<256x64xf32>
    %21 = arith.maximumf %19, %20 : vector<256x64xf32>
    %c0_18 = arith.constant 0 : index
    %c0_19 = arith.constant 0 : index
    %22 = vector.load %arg8[%c0_18, %c0_19] : memref<64x2xf32, #tpu.memory_space<vmem>>, vector<64x2xf32>
    %cst_20 = arith.constant dense<0.000000e+00> : vector<256x2xf32>
    %23 = tpu.matmul %21, %22, %cst_20 {dimension_numbers = #tpu.dot_dimension_numbers<[1], [0], [0], [1], [0, 0, 1, 1], [], []>} : vector<256x64xf32>, vector<64x2xf32>, vector<256x2xf32> -> vector<256x2xf32>
    %c0_21 = arith.constant 0 : index
    %c0_22 = arith.constant 0 : index
    %24 = vector.load %arg9[%c0_21, %c0_22] : memref<1x2xf32, #tpu.memory_space<vmem>>, vector<1x2xf32>
    %25 = vector.broadcast %24 : vector<1x2xf32> to vector<256x2xf32>
    %26 = arith.addf %23, %25 : vector<256x2xf32>
    %cst_23 = arith.constant 0.000000e+00 : f32
    %27 = vector.broadcast %cst_23 : f32 to vector<256x2xf32>
    %28 = arith.maximumf %26, %27 : vector<256x2xf32>
    %29 = math.absf %26 : vector<256x2xf32>
    %cst_24 = arith.constant 0.000000e+00 : f32
    %30 = vector.broadcast %cst_24 : f32 to vector<256x2xf32>
    %31 = arith.subf %30, %29 : vector<256x2xf32>
    %32 = math.exp %31 : vector<256x2xf32>
    %33 = math.log1p %32 : vector<256x2xf32>
    %34 = arith.addf %28, %33 : vector<256x2xf32>
    %35 = tpu.iota {dimensions = array<i32: 1>} : vector<256x2xi32>
    %c0_i32 = arith.constant 0 : i32
    %36 = vector.broadcast %c0_i32 : i32 to vector<256x2xi32>
    %37 = arith.cmpi eq, %35, %36 : vector<256x2xi32>
    %38 = arith.select %37, %26, %34 : vector<256x2xi1>, vector<256x2xf32>
    %c0_25 = arith.constant 0 : index
    %c0_26 = arith.constant 0 : index
    %39 = vector.load %arg10[%c0_25, %c0_26] : memref<256x2xf32, #tpu.memory_space<vmem>>, vector<256x2xf32>
    tpu.vector_store %arg10[%c0_25, %c0_26], %38 {strides = array<i32>} : memref<256x2xf32, #tpu.memory_space<vmem>>, vector<256x2xf32>,
    return
  }
  func.func @transform_0(%arg0: i32) -> (i32, i32) {
    %c0_i32 = arith.constant 0 : i32
    %c0_i32_0 = arith.constant 0 : i32
    return %arg0, %c0_i32 : i32, i32
  }
  func.func @transform_1(%arg0: i32) -> (i32, i32) {
    %c0_i32 = arith.constant 0 : i32
    %c0_i32_0 = arith.constant 0 : i32
    %c0_i32_1 = arith.constant 0 : i32
    return %c0_i32, %c0_i32_0 : i32, i32
  }
  func.func @transform_2(%arg0: i32) -> (i32, i32) {
    %c0_i32 = arith.constant 0 : i32
    %c0_i32_0 = arith.constant 0 : i32
    %c0_i32_1 = arith.constant 0 : i32
    return %c0_i32, %c0_i32_0 : i32, i32
  }
  func.func @transform_3(%arg0: i32) -> (i32, i32) {
    %c0_i32 = arith.constant 0 : i32
    %c0_i32_0 = arith.constant 0 : i32
    %c0_i32_1 = arith.constant 0 : i32
    return %c0_i32, %c0_i32_0 : i32, i32
  }
  func.func @transform_4(%arg0: i32) -> (i32, i32) {
    %c0_i32 = arith.constant 0 : i32
    %c0_i32_0 = arith.constant 0 : i32
    %c0_i32_1 = arith.constant 0 : i32
    return %c0_i32, %c0_i32_0 : i32, i32
  }
  func.func @transform_5(%arg0: i32) -> (i32, i32) {
    %c0_i32 = arith.constant 0 : i32
    %c0_i32_0 = arith.constant 0 : i32
    %c0_i32_1 = arith.constant 0 : i32
    return %c0_i32, %c0_i32_0 : i32, i32
  }
  func.func @transform_6(%arg0: i32) -> (i32, i32) {
    %c0_i32 = arith.constant 0 : i32
    %c0_i32_0 = arith.constant 0 : i32
    %c0_i32_1 = arith.constant 0 : i32
    return %c0_i32, %c0_i32_0 : i32, i32
  }
  func.func @transform_7(%arg0: i32) -> (i32, i32) {
    %c0_i32 = arith.constant 0 : i32
    %c0_i32_0 = arith.constant 0 : i32
    %c0_i32_1 = arith.constant 0 : i32
    return %c0_i32, %c0_i32_0 : i32, i32
  }
  func.func @transform_8(%arg0: i32) -> (i32, i32) {
    %c0_i32 = arith.constant 0 : i32
    %c0_i32_0 = arith.constant 0 : i32
    %c0_i32_1 = arith.constant 0 : i32
    return %c0_i32, %c0_i32_0 : i32, i32
  }
  func.func @transform_9(%arg0: i32) -> (i32, i32) {
    %c0_i32 = arith.constant 0 : i32
    %c0_i32_0 = arith.constant 0 : i32
    return %arg0, %c0_i32 : i32, i32
  }
}

</mosaic_0001>

<llo_original>
// kernel: tpu_custom_call.1
$region0: #{tpu_custom_call.1}
  #allocation0 [shape = 'u32[]', space=smem, size = 0x4, offset = 0x4, fixed_abs, tag = 'smem constant byte address 0x4 - core index']
  #allocation1 [shape = 'u32[72,128]{1,0:T(1,128)}', space=vmem, size = 0x9000, scoped, tag = 'internal scratch']
  %s0 = inlined_call_operand.vmem [shape: f32[512,6], index: 0, kind: input, shape index: {}]
  %s1 = inlined_call_operand.vmem [shape: f32[6,128], index: 1, kind: input, shape index: {}]
  %s2 = inlined_call_operand.vmem [shape: f32[1,128], index: 2, kind: input, shape index: {}]
  %s3 = inlined_call_operand.vmem [shape: f32[128,128], index: 3, kind: input, shape index: {}]
  %s4 = inlined_call_operand.vmem [shape: f32[1,128], index: 4, kind: input, shape index: {}]
  %s5 = inlined_call_operand.vmem [shape: f32[128,64], index: 5, kind: input, shape index: {}]
  %s6 = inlined_call_operand.vmem [shape: f32[1,64], index: 6, kind: input, shape index: {}]
  %s7 = inlined_call_operand.vmem [shape: f32[64,2], index: 7, kind: input, shape index: {}]
  %s8 = inlined_call_operand.vmem [shape: f32[1,2], index: 8, kind: input, shape index: {}]
  %s9 = inlined_call_operand.vmem [shape: f32[512,2], index: 9, kind: output, shape index: {}]
  %s10 = sld [smem:[#allocation0]]
  $region69: #{tpu_custom_call.1} parent=0
    _
  %s12 = ssub.s32 1, %s10
  %s13 = scalar_select 0, %s12, %s10
  loop: start=0, step=1, limit=4
  $region2: #{tpu_custom_call.1} parent=0 // loop_pre_header
    _
  $region3: #{tpu_custom_call.1} parent=0 // loop_header
    %s15 = sphi 0, %s19
    %p16 = scmp.ge.s32.totalorder %s15, 4
    %s25 = sphi 0, %s27
    %s28 = sphi 0, %s25
    %s29 = sphi 0, %s28
    %s45 = sphi 0, %s29
    %s49 = sphi 0, %s49
    %s51 = sphi 0, %s49
    %s52 = sphi 0, %s51
    %s66 = sphi 0, %s52
    %s70 = sphi 0, %s70
    %s72 = sphi 0, %s70
    %s73 = sphi 0, %s72
    %s87 = sphi 0, %s73
    %s91 = sphi 0, %s91
    %s93 = sphi 0, %s91
    %s94 = sphi 0, %s93
    %s108 = sphi 0, %s94
    %s112 = sphi 0, %s112
    %s114 = sphi 0, %s112
    %s115 = sphi 0, %s114
    %s129 = sphi 0, %s115
    %s133 = sphi 0, %s133
    %s135 = sphi 0, %s133
    %s136 = sphi 0, %s135
    %s150 = sphi 0, %s136
    %s154 = sphi 0, %s154
    %s156 = sphi 0, %s154
    %s157 = sphi 0, %s156
    %s171 = sphi 0, %s157
    %s175 = sphi 0, %s175
    %s177 = sphi 0, %s175
    %s178 = sphi 0, %s177
    %s192 = sphi 0, %s178
    %s196 = sphi 0, %s196
    %s198 = sphi 0, %s196
    %s199 = sphi 0, %s198
    %s213 = sphi 0, %s199
    %s219 = sphi 0, %s221
    %s222 = sphi 0, %s219
    %s223 = sphi 0, %s222
    %s239 = sphi 0, %s223
  $region4: #{tpu_custom_call.1} parent=0 // loop_header_branch
    %18 = sbr.rel (%p16) target = $region8
  $region5: #{tpu_custom_call.1} parent=0 // loop_body
    %s20 = ssub.s32 %s15, 1
    %s21 = ssub.s32 %s15, 2
    %s22 = sadd.s32 %s15, 1
    %s23 = ssub.s32 %s15, %s22
    %p24 = scmp.eq.s32.totalorder %s23, 0
    %s26 = sadd.s32 %s25, 1
    %s27 = scalar_select %p24, %s25, %s26
    %p30 = pneg %p24
    %p31 = scmp.eq.s32.totalorder %s15, 1
    %p32 = por %p30, %p31
    %p33 = scmp.ne.s32.totalorder %s25, %s28
    %p34 = scmp.eq.s32.totalorder %s15, 0
    %p35 = por %p33, %p34
    %p36 = scmp.ne.s32.totalorder %s25, %s28
    %p37 = scmp.eq.s32.totalorder %s20, 1
    %p38 = por %p36, %p37
    %p39 = scmp.ne.s32.totalorder %s28, %s29
    %p40 = scmp.eq.s32.totalorder %s20, 0
    %p41 = por %p39, %p40
    %p42 = scmp.ne.s32.totalorder %s28, %s29
    %p43 = scmp.eq.s32.totalorder %s21, 1
    %p44 = por %p42, %p43
    %p46 = scmp.ne.s32.totalorder %s29, %s45
    %p47 = scmp.eq.s32.totalorder %s21, 0
    %p48 = por %p46, %p47
    %s50 = sadd.s32 %s49, 1
    %p53 = scmp.eq.s32.totalorder %s15, 1
    %p54 = scmp.ne.s32.totalorder %s49, %s51
    %p55 = scmp.eq.s32.totalorder %s15, 0
    %p56 = por %p54, %p55
    %p57 = scmp.ne.s32.totalorder %s49, %s51
    %p58 = scmp.eq.s32.totalorder %s20, 1
    %p59 = por %p57, %p58
    %p60 = scmp.ne.s32.totalorder %s51, %s52
    %p61 = scmp.eq.s32.totalorder %s20, 0
    %p62 = por %p60, %p61
    %p63 = scmp.ne.s32.totalorder %s51, %s52
    %p64 = scmp.eq.s32.totalorder %s21, 1
    %p65 = por %p63, %p64
    %p67 = scmp.ne.s32.totalorder %s52, %s66
    %p68 = scmp.eq.s32.totalorder %s21, 0
    %p69 = por %p67, %p68
    %s71 = sadd.s32 %s70, 1
    %p74 = scmp.eq.s32.totalorder %s15, 1
    %p75 = scmp.ne.s32.totalorder %s70, %s72
    %p76 = scmp.eq.s32.totalorder %s15, 0
    %p77 = por %p75, %p76
    %p78 = scmp.ne.s32.totalorder %s70, %s72
    %p79 = scmp.eq.s32.totalorder %s20, 1
    %p80 = por %p78, %p79
    %p81 = scmp.ne.s32.totalorder %s72, %s73
    %p82 = scmp.eq.s32.totalorder %s20, 0
    %p83 = por %p81, %p82
    %p84 = scmp.ne.s32.totalorder %s72, %s73
    %p85 = scmp.eq.s32.totalorder %s21, 1
    %p86 = por %p84, %p85
    %p88 = scmp.ne.s32.totalorder %s73, %s87
    %p89 = scmp.eq.s32.totalorder %s21, 0
    %p90 = por %p88, %p89
    %s92 = sadd.s32 %s91, 1
    %p95 = scmp.eq.s32.totalorder %s15, 1
    %p96 = scmp.ne.s32.totalorder %s91, %s93
    %p97 = scmp.eq.s32.totalorder %s15, 0
    %p98 = por %p96, %p97
    %p99 = scmp.ne.s32.totalorder %s91, %s93
    %p100 = scmp.eq.s32.totalorder %s20, 1
    %p101 = por %p99, %p100
    %p102 = scmp.ne.s32.totalorder %s93, %s94
    %p103 = scmp.eq.s32.totalorder %s20, 0
    %p104 = por %p102, %p103
    %p105 = scmp.ne.s32.totalorder %s93, %s94
    %p106 = scmp.eq.s32.totalorder %s21, 1
    %p107 = por %p105, %p106
    %p109 = scmp.ne.s32.totalorder %s94, %s108
    %p110 = scmp.eq.s32.totalorder %s21, 0
    %p111 = por %p109, %p110
    %s113 = sadd.s32 %s112, 1
    %p116 = scmp.eq.s32.totalorder %s15, 1
    %p117 = scmp.ne.s32.totalorder %s112, %s114
    %p118 = scmp.eq.s32.totalorder %s15, 0
    %p119 = por %p117, %p118
    %p120 = scmp.ne.s32.totalorder %s112, %s114
    %p121 = scmp.eq.s32.totalorder %s20, 1
    %p122 = por %p120, %p121
    %p123 = scmp.ne.s32.totalorder %s114, %s115
    %p124 = scmp.eq.s32.totalorder %s20, 0
    %p125 = por %p123, %p124
    %p126 = scmp.ne.s32.totalorder %s114, %s115
    %p127 = scmp.eq.s32.totalorder %s21, 1
    %p128 = por %p126, %p127
    %p130 = scmp.ne.s32.totalorder %s115, %s129
    %p131 = scmp.eq.s32.totalorder %s21, 0
    %p132 = por %p130, %p131
    %s134 = sadd.s32 %s133, 1
    %p137 = scmp.eq.s32.totalorder %s15, 1
    %p138 = scmp.ne.s32.totalorder %s133, %s135
    %p139 = scmp.eq.s32.totalorder %s15, 0
    %p140 = por %p138, %p139
    %p141 = scmp.ne.s32.totalorder %s133, %s135
    %p142 = scmp.eq.s32.totalorder %s20, 1
    %p143 = por %p141, %p142
    %p144 = scmp.ne.s32.totalorder %s135, %s136
    %p145 = scmp.eq.s32.totalorder %s20, 0
    %p146 = por %p144, %p145
    %p147 = scmp.ne.s32.totalorder %s135, %s136
    %p148 = scmp.eq.s32.totalorder %s21, 1
    %p149 = por %p147, %p148
    %p151 = scmp.ne.s32.totalorder %s136, %s150
    %p152 = scmp.eq.s32.totalorder %s21, 0
    %p153 = por %p151, %p152
    %s155 = sadd.s32 %s154, 1
    %p158 = scmp.eq.s32.totalorder %s15, 1
    %p159 = scmp.ne.s32.totalorder %s154, %s156
    %p160 = scmp.eq.s32.totalorder %s15, 0
    %p161 = por %p159, %p160
    %p162 = scmp.ne.s32.totalorder %s154, %s156
    %p163 = scmp.eq.s32.totalorder %s20, 1
    %p164 = por %p162, %p163
    %p165 = scmp.ne.s32.totalorder %s156, %s157
    %p166 = scmp.eq.s32.totalorder %s20, 0
    %p167 = por %p165, %p166
    %p168 = scmp.ne.s32.totalorder %s156, %s157
    %p169 = scmp.eq.s32.totalorder %s21, 1
    %p170 = por %p168, %p169
    %p172 = scmp.ne.s32.totalorder %s157, %s171
    %p173 = scmp.eq.s32.totalorder %s21, 0
    %p174 = por %p172, %p173
    %s176 = sadd.s32 %s175, 1
    %p179 = scmp.eq.s32.totalorder %s15, 1
    %p180 = scmp.ne.s32.totalorder %s175, %s177
    %p181 = scmp.eq.s32.totalorder %s15, 0
    %p182 = por %p180, %p181
    %p183 = scmp.ne.s32.totalorder %s175, %s177
    %p184 = scmp.eq.s32.totalorder %s20, 1
    %p185 = por %p183, %p184
    %p186 = scmp.ne.s32.totalorder %s177, %s178
    %p187 = scmp.eq.s32.totalorder %s20, 0
    %p188 = por %p186, %p187
    %p189 = scmp.ne.s32.totalorder %s177, %s178
    %p190 = scmp.eq.s32.totalorder %s21, 1
    %p191 = por %p189, %p190
    %p193 = scmp.ne.s32.totalorder %s178, %s192
    %p194 = scmp.eq.s32.totalorder %s21, 0
    %p195 = por %p193, %p194
    %s197 = sadd.s32 %s196, 1
    %p200 = scmp.eq.s32.totalorder %s15, 1
    %p201 = scmp.ne.s32.totalorder %s196, %s198
    %p202 = scmp.eq.s32.totalorder %s15, 0
    %p203 = por %p201, %p202
    %p204 = scmp.ne.s32.totalorder %s196, %s198
    %p205 = scmp.eq.s32.totalorder %s20, 1
    %p206 = por %p204, %p205
    %p207 = scmp.ne.s32.totalorder %s198, %s199
    %p208 = scmp.eq.s32.totalorder %s20, 0
    %p209 = por %p207, %p208
    %p210 = scmp.ne.s32.totalorder %s198, %s199
    %p211 = scmp.eq.s32.totalorder %s21, 1
    %p212 = por %p210, %p211
    %p214 = scmp.ne.s32.totalorder %s199, %s213
    %p215 = scmp.eq.s32.totalorder %s21, 0
    %p216 = por %p214, %p215
    %s217 = ssub.s32 %s15, %s22
    %p218 = scmp.eq.s32.totalorder %s217, 0
    %s220 = sadd.s32 %s219, 1
    %s221 = scalar_select %p218, %s219, %s220
    %p224 = pneg %p218
    %p225 = scmp.eq.s32.totalorder %s15, 1
    %p226 = por %p224, %p225
    %p227 = scmp.ne.s32.totalorder %s219, %s222
    %p228 = scmp.eq.s32.totalorder %s15, 0
    %p229 = por %p227, %p228
    %p230 = scmp.ne.s32.totalorder %s219, %s222
    %p231 = scmp.eq.s32.totalorder %s20, 1
    %p232 = por %p230, %p231
    %p233 = scmp.ne.s32.totalorder %s222, %s223
    %p234 = scmp.eq.s32.totalorder %s20, 0
    %p235 = por %p233, %p234
    %p236 = scmp.ne.s32.totalorder %s222, %s223
    %p237 = scmp.eq.s32.totalorder %s21, 1
    %p238 = por %p236, %p237
    %p240 = scmp.ne.s32.totalorder %s223, %s239
    %p241 = scmp.eq.s32.totalorder %s21, 0
    %p242 = por %p240, %p241
    %p243 = scmp.le.s32.totalorder 1, %s15
    %p244 = scmp.lt.s32.totalorder %s15, 3
    %p245 = pnand %p243, %p244
    %p246 = pneg %p245
    // Predicated region
    $region9: #{tpu_custom_call.1} parent=5 // pred_check
      _
    $region10: #{tpu_custom_call.1} parent=5 // pred_check_branch
      %248 = sbr.rel (%p245) target = $region12
    $region11: #{tpu_custom_call.1} parent=5 // pred_region
      %s249 = ssub.s32 %s15, 1
      // Predicated region
      $region13: #{tpu_custom_call.1} parent=11 // pred_check
        %p250 = pneg %p62
      $region14: #{tpu_custom_call.1} parent=11 // pred_check_branch
        %252 = sbr.rel (%p250) target = $region16
      $region15: #{tpu_custom_call.1} parent=11 // pred_region
        _
      $region16: #{tpu_custom_call.1} parent=11 // pred_fallthru
        _
      // Predicated region
      $region17: #{tpu_custom_call.1} parent=11 // pred_check
        %p253 = pneg %p83
      $region18: #{tpu_custom_call.1} parent=11 // pred_check_branch
        %255 = sbr.rel (%p253) target = $region20
      $region19: #{tpu_custom_call.1} parent=11 // pred_region
        _
      $region20: #{tpu_custom_call.1} parent=11 // pred_fallthru
        _
      // Predicated region
      $region21: #{tpu_custom_call.1} parent=11 // pred_check
        %p256 = pneg %p104
      $region22: #{tpu_custom_call.1} parent=11 // pred_check_branch
        %258 = sbr.rel (%p256) target = $region24
      $region23: #{tpu_custom_call.1} parent=11 // pred_region
        _
      $region24: #{tpu_custom_call.1} parent=11 // pred_fallthru
        _
      // Predicated region
      $region25: #{tpu_custom_call.1} parent=11 // pred_check
        %p259 = pneg %p125
      $region26: #{tpu_custom_call.1} parent=11 // pred_check_branch
        %261 = sbr.rel (%p259) target = $region28
      $region27: #{tpu_custom_call.1} parent=11 // pred_region
        _
      $region28: #{tpu_custom_call.1} parent=11 // pred_fallthru
        _
      // Predicated region
      $region29: #{tpu_custom_call.1} parent=11 // pred_check
        %p262 = pneg %p146
      $region30: #{tpu_custom_call.1} parent=11 // pred_check_branch
        %264 = sbr.rel (%p262) target = $region32
      $region31: #{tpu_custom_call.1} parent=11 // pred_region
        _
      $region32: #{tpu_custom_call.1} parent=11 // pred_fallthru
        _
      // Predicated region
      $region33: #{tpu_custom_call.1} parent=11 // pred_check
        %p265 = pneg %p167
      $region34: #{tpu_custom_call.1} parent=11 // pred_check_branch
        %267 = sbr.rel (%p265) target = $region36
      $region35: #{tpu_custom_call.1} parent=11 // pred_region
        _
      $region36: #{tpu_custom_call.1} parent=11 // pred_fallthru
        _
      // Predicated region
      $region37: #{tpu_custom_call.1} parent=11 // pred_check
        %p268 = pneg %p188
      $region38: #{tpu_custom_call.1} parent=11 // pred_check_branch
        %270 = sbr.rel (%p268) target = $region40
      $region39: #{tpu_custom_call.1} parent=11 // pred_region
        _
      $region40: #{tpu_custom_call.1} parent=11 // pred_fallthru
        _
      // Predicated region
      $region41: #{tpu_custom_call.1} parent=11 // pred_check
        %p271 = pneg %p209
      $region42: #{tpu_custom_call.1} parent=11 // pred_check_branch
        %273 = sbr.rel (%p271) target = $region44
      $region43: #{tpu_custom_call.1} parent=11 // pred_region
        _
      $region44: #{tpu_custom_call.1} parent=11 // pred_fallthru
        _
    $region12: #{tpu_custom_call.1} parent=5 // pred_fallthru
      _
    %p274 = scmp.lt.s32.totalorder %s15, 2
    // Predicated region
    $region45: #{tpu_custom_call.1} parent=5 // pred_check
      %p275 = pneg %p274
    $region46: #{tpu_custom_call.1} parent=5 // pred_check_branch
      %277 = sbr.rel (%p275) target = $region48
    $region47: #{tpu_custom_call.1} parent=5 // pred_region
      // Predicated region
      $region49: #{tpu_custom_call.1} parent=47 // pred_check
        %p278 = pneg %p35
      $region50: #{tpu_custom_call.1} parent=47 // pred_check_branch
        %280 = sbr.rel (%p278) target = $region52
      $region51: #{tpu_custom_call.1} parent=47 // pred_region
        %s281 = smul.u32 32, %s15
        %p282 = scmp.lt.s32.totalorder %s281, 63
        %s283 = scalar_select %p282, %s281, 63
        %s284 = smul.addr %s283, 8
        %s285 = scalar_lea.vmem %s0, %s284
        %s286 = smul.u32 32, %s15
      $region52: #{tpu_custom_call.1} parent=47 // pred_fallthru
        _
    $region48: #{tpu_custom_call.1} parent=5 // pred_fallthru
      _
    %p287 = scmp.le.s32.totalorder 1, %s15
    %p288 = scmp.lt.s32.totalorder %s15, 3
    %p289 = pnand %p287, %p288
    %p290 = pneg %p289
    // Predicated region
    $region53: #{tpu_custom_call.1} parent=5 // pred_check
      _
    $region54: #{tpu_custom_call.1} parent=5 // pred_check_branch
      %292 = sbr.rel (%p289) target = $region56
    $region55: #{tpu_custom_call.1} parent=5 // pred_region
      %s293 = ssub.s32 %s15, 1
      %s294 = smul.u32 32, %s20
      %p295 = scmp.lt.s32.totalorder %s294, 63
      %s296 = scalar_select %p295, %s294, 63
      %s297 = smul.addr %s296, 8
      %s298 = scalar_lea.vmem %s0, %s297
      %p299 = pneg %p41
      %p300 = pneg %p38
      %p301 = pneg %p62
      %p302 = pneg %p59
      %p303 = pneg %p83
      %p304 = pneg %p80
      %p305 = pneg %p104
      %p306 = pneg %p101
      %p307 = pneg %p125
      %p308 = pneg %p122
      %p309 = pneg %p146
      %p310 = pneg %p143
      %p311 = pneg %p167
      %p312 = pneg %p164
      %p313 = pneg %p188
      %p314 = pneg %p185
      %p315 = pneg %p209
      %p316 = pneg %p206
      %p317 = pneg %p235
      %p318 = pneg %p232
      %s319 = smul.u32 32, %s20
      %p320 = scmp.lt.s32.totalorder %s319, 63
      %s321 = scalar_select %p320, %s319, 63
      %s322 = smul.addr %s321, 8
      %s323 = scalar_lea.vmem %s9, %s322
      %s324 = smul.u32 32, %s20
      %p325 = scmp.lt.s32.totalorder %s324, 63
      %s326 = scalar_select %p325, %s324, 63
      %s327 = smul.addr %s326, 8
      %s328 = scalar_lea.vmem %s0, %s327
      %s329 = smul.u32 32, %s20
      %s330 = smul.u32 32, %s20
      %p331 = scmp.lt.s32.totalorder %s330, 63
      %s332 = scalar_select %p331, %s330, 63
      %s333 = smul.addr %s332, 8
      %s334 = scalar_lea.vmem %s9, %s333
      %s335 = smul.u32 32, %s20
      %v336 = vld [vmem:[%s328] sm:$0xff]
      %v337 = vld [vmem:[%s328 + $0x8] sm:$0xff]
      %v338 = vld [vmem:[%s328 + $0x10] sm:$0xff]
      %v339 = vld [vmem:[%s328 + $0x18] sm:$0xff]
      %v340 = vld [vmem:[%s328 + $0x20] sm:$0xff]
      %v341 = vld [vmem:[%s328 + $0x28] sm:$0xff]
      %v342 = vld [vmem:[%s328 + $0x30] sm:$0xff]
      %v343 = vld [vmem:[%s328 + $0x38] sm:$0xff]
      %v344 = vld [vmem:[%s328 + $0x40] sm:$0xff]
      %v345 = vld [vmem:[%s328 + $0x48] sm:$0xff]
      %v346 = vld [vmem:[%s328 + $0x50] sm:$0xff]
      %v347 = vld [vmem:[%s328 + $0x58] sm:$0xff]
      %v348 = vld [vmem:[%s328 + $0x60] sm:$0xff]
      %v349 = vld [vmem:[%s328 + $0x68] sm:$0xff]
      %v350 = vld [vmem:[%s328 + $0x70] sm:$0xff]
      %v351 = vld [vmem:[%s328 + $0x78] sm:$0xff]
      %v352 = vld [vmem:[%s328 + $0x80] sm:$0xff]
      %v353 = vld [vmem:[%s328 + $0x88] sm:$0xff]
      %v354 = vld [vmem:[%s328 + $0x90] sm:$0xff]
      %v355 = vld [vmem:[%s328 + $0x98] sm:$0xff]
      %v356 = vld [vmem:[%s328 + $0xa0] sm:$0xff]
      %v357 = vld [vmem:[%s328 + $0xa8] sm:$0xff]
      %v358 = vld [vmem:[%s328 + $0xb0] sm:$0xff]
      %v359 = vld [vmem:[%s328 + $0xb8] sm:$0xff]
      %v360 = vld [vmem:[%s328 + $0xc0] sm:$0xff]
      %v361 = vld [vmem:[%s328 + $0xc8] sm:$0xff]
      %v362 = vld [vmem:[%s328 + $0xd0] sm:$0xff]
      %v363 = vld [vmem:[%s328 + $0xd8] sm:$0xff]
      %v364 = vld [vmem:[%s328 + $0xe0] sm:$0xff]
      %v365 = vld [vmem:[%s328 + $0xe8] sm:$0xff]
      %v366 = vld [vmem:[%s328 + $0xf0] sm:$0xff]
      %v367 = vld [vmem:[%s328 + $0xf8] sm:$0xff]
      %v368 = vld [vmem:[%s1] sm:$0x3f]
      %v369 = vld [vmem:[%s2] sm:$0x1]
      %v371 = vperm.slane %v369, 0
      %vm373 = vcmask 48128
      %v375 = vsel %vm373, %v336, 0
      %v378 = vsel %vm373, %v337, 0
      %v381 = vsel %vm373, %v338, 0
      %v384 = vsel %vm373, %v339, 0
      %v387 = vsel %vm373, %v340, 0
      %v390 = vsel %vm373, %v341, 0
      %v393 = vsel %vm373, %v342, 0
      %v396 = vsel %vm373, %v343, 0
      %v399 = vsel %vm373, %v344, 0
      %v402 = vsel %vm373, %v345, 0
      %v405 = vsel %vm373, %v346, 0
      %v408 = vsel %vm373, %v347, 0
      %v411 = vsel %vm373, %v348, 0
      %v414 = vsel %vm373, %v349, 0
      %v417 = vsel %vm373, %v350, 0
      %v420 = vsel %vm373, %v351, 0
      %v423 = vsel %vm373, %v352, 0
      %v426 = vsel %vm373, %v353, 0
      %v429 = vsel %vm373, %v354, 0
      %v432 = vsel %vm373, %v355, 0
      %v435 = vsel %vm373, %v356, 0
      %v438 = vsel %vm373, %v357, 0
      %v441 = vsel %vm373, %v358, 0
      %v444 = vsel %vm373, %v359, 0
      %v447 = vsel %vm373, %v360, 0
      %v450 = vsel %vm373, %v361, 0
      %v453 = vsel %vm373, %v362, 0
      %v456 = vsel %vm373, %v363, 0
      %v459 = vsel %vm373, %v364, 0
      %v462 = vsel %vm373, %v365, 0
      %v465 = vsel %vm373, %v366, 0
      %v468 = vsel %vm373, %v367, 0
      %vm470 = vcmask 1045504
      %v472 = vsel %vm470, %v368, 0
      %474 = vmatpush.msra.mxu0 0.0
      %475 = vmatpush.msra.mxu0 0.0
      %476 = vmatpush.msra.mxu0 0.0
      %477 = vmatpush.msra.mxu0 0.0
      %478 = vmatpush.msra.mxu0 0.0
      %479 = vmatpush.msra.mxu0 0.0
      %480 = vmatpush.msra.mxu0 0.0
      %481 = vmatpush.msra.mxu0 0.0
      %482 = vmatpush.msra.mxu0 0.0
      %483 = vmatpush.msra.mxu0 0.0
      %484 = vmatpush.msra.mxu0 0.0
      %485 = vmatpush.msra.mxu0 0.0
      %486 = vmatpush.msra.mxu0 0.0
      %487 = vmatpush.msra.mxu0 0.0
      %488 = vmatpush.msra.mxu0 0.0
      %489 = vmatpush.msra.mxu0 %v472
      %490 = vmatmul.f32.gmra.mxu0 %v375
      %v491 = vpop.f32.mrf.mxu0
      %v492 = vadd.f32 %v371, %v491
      %493 = vmatmul.f32.gmra.mxu0 %v378
      %v494 = vpop.f32.mrf.mxu0
      %v495 = vadd.f32 %v371, %v494
      %496 = vmatmul.f32.gmra.mxu0 %v381
      %v497 = vpop.f32.mrf.mxu0
      %v498 = vadd.f32 %v371, %v497
      %499 = vmatmul.f32.gmra.mxu0 %v384
      %v500 = vpop.f32.mrf.mxu0
      %v501 = vadd.f32 %v371, %v500
      %502 = vmatmul.f32.gmra.mxu0 %v387
      %v503 = vpop.f32.mrf.mxu0
      %v504 = vadd.f32 %v371, %v503
      %505 = vmatmul.f32.gmra.mxu0 %v390
      %v506 = vpop.f32.mrf.mxu0
      %v507 = vadd.f32 %v371, %v506
      %508 = vmatmul.f32.gmra.mxu0 %v393
      %v509 = vpop.f32.mrf.mxu0
      %v510 = vadd.f32 %v371, %v509
      %511 = vmatmul.f32.gmra.mxu0 %v396
      %v512 = vpop.f32.mrf.mxu0
      %v513 = vadd.f32 %v371, %v512
      %514 = vmatmul.f32.gmra.mxu0 %v399
      %v515 = vpop.f32.mrf.mxu0
      %v516 = vadd.f32 %v371, %v515
      %517 = vmatmul.f32.gmra.mxu0 %v402
      %v518 = vpop.f32.mrf.mxu0
      %v519 = vadd.f32 %v371, %v518
      %520 = vmatmul.f32.gmra.mxu0 %v405
      %v521 = vpop.f32.mrf.mxu0
      %v522 = vadd.f32 %v371, %v521
      %523 = vmatmul.f32.gmra.mxu0 %v408
      %v524 = vpop.f32.mrf.mxu0
      %v525 = vadd.f32 %v371, %v524
      %526 = vmatmul.f32.gmra.mxu0 %v411
      %v527 = vpop.f32.mrf.mxu0
      %v528 = vadd.f32 %v371, %v527
      %529 = vmatmul.f32.gmra.mxu0 %v414
      %v530 = vpop.f32.mrf.mxu0
      %v531 = vadd.f32 %v371, %v530
      %532 = vmatmul.f32.gmra.mxu0 %v417
      %v533 = vpop.f32.mrf.mxu0
      %v534 = vadd.f32 %v371, %v533
      %535 = vmatmul.f32.gmra.mxu0 %v420
      %v536 = vpop.f32.mrf.mxu0
      %v537 = vadd.f32 %v371, %v536
      %538 = vmatmul.f32.gmra.mxu0 %v423
      %v539 = vpop.f32.mrf.mxu0
      %v540 = vadd.f32 %v371, %v539
      %541 = vmatmul.f32.gmra.mxu0 %v426
      %v542 = vpop.f32.mrf.mxu0
      %v543 = vadd.f32 %v371, %v542
      %544 = vmatmul.f32.gmra.mxu0 %v429
      %v545 = vpop.f32.mrf.mxu0
      %v546 = vadd.f32 %v371, %v545
      %547 = vmatmul.f32.gmra.mxu0 %v432
      %v548 = vpop.f32.mrf.mxu0
      %v549 = vadd.f32 %v371, %v548
      %550 = vmatmul.f32.gmra.mxu0 %v435
      %v551 = vpop.f32.mrf.mxu0
      %v552 = vadd.f32 %v371, %v551
      %553 = vmatmul.f32.gmra.mxu0 %v438
      %v554 = vpop.f32.mrf.mxu0
      %v555 = vadd.f32 %v371, %v554
      %556 = vmatmul.f32.gmra.mxu0 %v441
      %v557 = vpop.f32.mrf.mxu0
      %v558 = vadd.f32 %v371, %v557
      %559 = vmatmul.f32.gmra.mxu0 %v444
      %v560 = vpop.f32.mrf.mxu0
      %v561 = vadd.f32 %v371, %v560
      %562 = vmatmul.f32.gmra.mxu0 %v447
      %v563 = vpop.f32.mrf.mxu0
      %v564 = vadd.f32 %v371, %v563
      %565 = vmatmul.f32.gmra.mxu0 %v450
      %v566 = vpop.f32.mrf.mxu0
      %v567 = vadd.f32 %v371, %v566
      %568 = vmatmul.f32.gmra.mxu0 %v453
      %v569 = vpop.f32.mrf.mxu0
      %v570 = vadd.f32 %v371, %v569
      %571 = vmatmul.f32.gmra.mxu0 %v456
      %v572 = vpop.f32.mrf.mxu0
      %v573 = vadd.f32 %v371, %v572
      %574 = vmatmul.f32.gmra.mxu0 %v459
      %v575 = vpop.f32.mrf.mxu0
      %v576 = vadd.f32 %v371, %v575
      %577 = vmatmul.f32.gmra.mxu0 %v462
      %v578 = vpop.f32.mrf.mxu0
      %v579 = vadd.f32 %v371, %v578
      %580 = vmatmul.f32.gmra.mxu0 %v465
      %v581 = vpop.f32.mrf.mxu0
      %v582 = vadd.f32 %v371, %v581
      %583 = vmatmul.f32.gmra.mxu0 %v468
      %v584 = vpop.f32.mrf.mxu0
      %v585 = vadd.f32 %v371, %v584
      %586 = vdwg.mxu0
      %v587 = vmax.f32 %v492, 0.0
      %v588 = vmax.f32 %v495, 0.0
      %v589 = vmax.f32 %v498, 0.0
      %v590 = vmax.f32 %v501, 0.0
      %v591 = vmax.f32 %v504, 0.0
      %v592 = vmax.f32 %v507, 0.0
      %v593 = vmax.f32 %v510, 0.0
      %v594 = vmax.f32 %v513, 0.0
      %v595 = vmax.f32 %v516, 0.0
      %v596 = vmax.f32 %v519, 0.0
      %v597 = vmax.f32 %v522, 0.0
      %v598 = vmax.f32 %v525, 0.0
      %v599 = vmax.f32 %v528, 0.0
      %v600 = vmax.f32 %v531, 0.0
      %v601 = vmax.f32 %v534, 0.0
      %v602 = vmax.f32 %v537, 0.0
      %v603 = vmax.f32 %v540, 0.0
      %v604 = vmax.f32 %v543, 0.0
      %v605 = vmax.f32 %v546, 0.0
      %v606 = vmax.f32 %v549, 0.0
      %v607 = vmax.f32 %v552, 0.0
      %v608 = vmax.f32 %v555, 0.0
      %v609 = vmax.f32 %v558, 0.0
      %v610 = vmax.f32 %v561, 0.0
      %v611 = vmax.f32 %v564, 0.0
      %v612 = vmax.f32 %v567, 0.0
      %v613 = vmax.f32 %v570, 0.0
      %v614 = vmax.f32 %v573, 0.0
      %v615 = vmax.f32 %v576, 0.0
      %v616 = vmax.f32 %v579, 0.0
      %v617 = vmax.f32 %v582, 0.0
      %v618 = vmax.f32 %v585, 0.0
      %v619 = vld [vmem:[%s3] sm:$0xff]
      %v620 = vld [vmem:[%s3 + $0x8] sm:$0xff]
      %v621 = vld [vmem:[%s3 + $0x10] sm:$0xff]
      %v622 = vld [vmem:[%s3 + $0x18] sm:$0xff]
      %v623 = vld [vmem:[%s3 + $0x20] sm:$0xff]
      %v624 = vld [vmem:[%s3 + $0x28] sm:$0xff]
      %v625 = vld [vmem:[%s3 + $0x30] sm:$0xff]
      %v626 = vld [vmem:[%s3 + $0x38] sm:$0xff]
      %v627 = vld [vmem:[%s3 + $0x40] sm:$0xff]
      %v628 = vld [vmem:[%s3 + $0x48] sm:$0xff]
      %v629 = vld [vmem:[%s3 + $0x50] sm:$0xff]
      %v630 = vld [vmem:[%s3 + $0x58] sm:$0xff]
      %v631 = vld [vmem:[%s3 + $0x60] sm:$0xff]
      %v632 = vld [vmem:[%s3 + $0x68] sm:$0xff]
      %v633 = vld [vmem:[%s3 + $0x70] sm:$0xff]
      %v634 = vld [vmem:[%s3 + $0x78] sm:$0xff]
      %v635 = vld [vmem:[%s4] sm:$0x1]
      %v637 = vperm.slane %v635, 0
      %639 = vmatpush.msra.mxu0 %v634
      %640 = vmatpush.msra.mxu0 %v633
      %641 = vmatpush.msra.mxu0 %v632
      %642 = vmatpush.msra.mxu0 %v631
      %643 = vmatpush.msra.mxu0 %v630
      %644 = vmatpush.msra.mxu0 %v629
      %645 = vmatpush.msra.mxu0 %v628
      %646 = vmatpush.msra.mxu0 %v627
      %647 = vmatpush.msra.mxu0 %v626
      %648 = vmatpush.msra.mxu0 %v625
      %649 = vmatpush.msra.mxu0 %v624
      %650 = vmatpush.msra.mxu0 %v623
      %651 = vmatpush.msra.mxu0 %v622
      %652 = vmatpush.msra.mxu0 %v621
      %653 = vmatpush.msra.mxu0 %v620
      %654 = vmatpush.msra.mxu0 %v619
      %655 = vmatmul.f32.gmra.mxu0 %v587
      %v656 = vpop.f32.mrf.mxu0
      %v657 = vadd.f32 %v637, %v656
      %658 = vmatmul.f32.gmra.mxu0 %v588
      %v659 = vpop.f32.mrf.mxu0
      %v660 = vadd.f32 %v637, %v659
      %661 = vmatmul.f32.gmra.mxu0 %v589
      %v662 = vpop.f32.mrf.mxu0
      %v663 = vadd.f32 %v637, %v662
      %664 = vmatmul.f32.gmra.mxu0 %v590
      %v665 = vpop.f32.mrf.mxu0
      %v666 = vadd.f32 %v637, %v665
      %667 = vmatmul.f32.gmra.mxu0 %v591
      %v668 = vpop.f32.mrf.mxu0
      %v669 = vadd.f32 %v637, %v668
      %670 = vmatmul.f32.gmra.mxu0 %v592
      %v671 = vpop.f32.mrf.mxu0
      %v672 = vadd.f32 %v637, %v671
      %673 = vmatmul.f32.gmra.mxu0 %v593
      %v674 = vpop.f32.mrf.mxu0
      %v675 = vadd.f32 %v637, %v674
      %676 = vmatmul.f32.gmra.mxu0 %v594
      %v677 = vpop.f32.mrf.mxu0
      %v678 = vadd.f32 %v637, %v677
      %679 = vmatmul.f32.gmra.mxu0 %v595
      %v680 = vpop.f32.mrf.mxu0
      %v681 = vadd.f32 %v637, %v680
      %682 = vmatmul.f32.gmra.mxu0 %v596
      %v683 = vpop.f32.mrf.mxu0
      %v684 = vadd.f32 %v637, %v683
      %685 = vmatmul.f32.gmra.mxu0 %v597
      %v686 = vpop.f32.mrf.mxu0
      %v687 = vadd.f32 %v637, %v686
      %688 = vmatmul.f32.gmra.mxu0 %v598
      %v689 = vpop.f32.mrf.mxu0
      %v690 = vadd.f32 %v637, %v689
      %691 = vmatmul.f32.gmra.mxu0 %v599
      %v692 = vpop.f32.mrf.mxu0
      %v693 = vadd.f32 %v637, %v692
      %694 = vmatmul.f32.gmra.mxu0 %v600
      %v695 = vpop.f32.mrf.mxu0
      %v696 = vadd.f32 %v637, %v695
      %697 = vmatmul.f32.gmra.mxu0 %v601
      %v698 = vpop.f32.mrf.mxu0
      %v699 = vadd.f32 %v637, %v698
      %700 = vmatmul.f32.gmra.mxu0 %v602
      %v701 = vpop.f32.mrf.mxu0
      %v702 = vadd.f32 %v637, %v701
      %703 = vmatmul.f32.gmra.mxu0 %v603
      %v704 = vpop.f32.mrf.mxu0
      %v705 = vadd.f32 %v637, %v704
      %706 = vmatmul.f32.gmra.mxu0 %v604
      %v707 = vpop.f32.mrf.mxu0
      %v708 = vadd.f32 %v637, %v707
      %709 = vmatmul.f32.gmra.mxu0 %v605
      %v710 = vpop.f32.mrf.mxu0
      %v711 = vadd.f32 %v637, %v710
      %712 = vmatmul.f32.gmra.mxu0 %v606
      %v713 = vpop.f32.mrf.mxu0
      %v714 = vadd.f32 %v637, %v713
      %715 = vmatmul.f32.gmra.mxu0 %v607
      %v716 = vpop.f32.mrf.mxu0
      %v717 = vadd.f32 %v637, %v716
      %718 = vmatmul.f32.gmra.mxu0 %v608
      %v719 = vpop.f32.mrf.mxu0
      %v720 = vadd.f32 %v637, %v719
      %721 = vmatmul.f32.gmra.mxu0 %v609
      %v722 = vpop.f32.mrf.mxu0
      %v723 = vadd.f32 %v637, %v722
      %724 = vmatmul.f32.gmra.mxu0 %v610
      %v725 = vpop.f32.mrf.mxu0
      %v726 = vadd.f32 %v637, %v725
      %727 = vmatmul.f32.gmra.mxu0 %v611
      %v728 = vpop.f32.mrf.mxu0
      %v729 = vadd.f32 %v637, %v728
      %730 = vmatmul.f32.gmra.mxu0 %v612
      %v731 = vpop.f32.mrf.mxu0
      %v732 = vadd.f32 %v637, %v731
      %733 = vmatmul.f32.gmra.mxu0 %v613
      %v734 = vpop.f32.mrf.mxu0
      %v735 = vadd.f32 %v637, %v734
      %736 = vmatmul.f32.gmra.mxu0 %v614
      %v737 = vpop.f32.mrf.mxu0
      %v738 = vadd.f32 %v637, %v737
      %739 = vmatmul.f32.gmra.mxu0 %v615
      %v740 = vpop.f32.mrf.mxu0
      %v741 = vadd.f32 %v637, %v740
      %742 = vmatmul.f32.gmra.mxu0 %v616
      %v743 = vpop.f32.mrf.mxu0
      %v744 = vadd.f32 %v637, %v743
      %745 = vmatmul.f32.gmra.mxu0 %v617
      %v746 = vpop.f32.mrf.mxu0
      %v747 = vadd.f32 %v637, %v746
      %748 = vmatmul.f32.gmra.mxu0 %v618
      %v749 = vpop.f32.mrf.mxu0
      %v750 = vadd.f32 %v637, %v749
      %751 = vdwg.mxu0
      %v752 = vmax.f32 %v657, 0.0
      %v753 = vmax.f32 %v660, 0.0
      %v754 = vmax.f32 %v663, 0.0
      %v755 = vmax.f32 %v666, 0.0
      %v756 = vmax.f32 %v669, 0.0
      %v757 = vmax.f32 %v672, 0.0
      %v758 = vmax.f32 %v675, 0.0
      %v759 = vmax.f32 %v678, 0.0
      %v760 = vmax.f32 %v681, 0.0
      %v761 = vmax.f32 %v684, 0.0
      %v762 = vmax.f32 %v687, 0.0
      %v763 = vmax.f32 %v690, 0.0
      %v764 = vmax.f32 %v693, 0.0
      %v765 = vmax.f32 %v696, 0.0
      %v766 = vmax.f32 %v699, 0.0
      %v767 = vmax.f32 %v702, 0.0
      %v768 = vmax.f32 %v705, 0.0
      %v769 = vmax.f32 %v708, 0.0
      %v770 = vmax.f32 %v711, 0.0
      %v771 = vmax.f32 %v714, 0.0
      %v772 = vmax.f32 %v717, 0.0
      %v773 = vmax.f32 %v720, 0.0
      %v774 = vmax.f32 %v723, 0.0
      %v775 = vmax.f32 %v726, 0.0
      %v776 = vmax.f32 %v729, 0.0
      %v777 = vmax.f32 %v732, 0.0
      %v778 = vmax.f32 %v735, 0.0
      %v779 = vmax.f32 %v738, 0.0
      %v780 = vmax.f32 %v741, 0.0
      %v781 = vmax.f32 %v744, 0.0
      %v782 = vmax.f32 %v747, 0.0
      %v783 = vmax.f32 %v750, 0.0
      %v784 = vld [vmem:[%s5] sm:$0xff]
      %v785 = vld [vmem:[%s5 + $0x8] sm:$0xff]
      %v786 = vld [vmem:[%s5 + $0x10] sm:$0xff]
      %v787 = vld [vmem:[%s5 + $0x18] sm:$0xff]
      %v788 = vld [vmem:[%s5 + $0x20] sm:$0xff]
      %v789 = vld [vmem:[%s5 + $0x28] sm:$0xff]
      %v790 = vld [vmem:[%s5 + $0x30] sm:$0xff]
      %v791 = vld [vmem:[%s5 + $0x38] sm:$0xff]
      %v792 = vld [vmem:[%s5 + $0x40] sm:$0xff]
      %v793 = vld [vmem:[%s5 + $0x48] sm:$0xff]
      %v794 = vld [vmem:[%s5 + $0x50] sm:$0xff]
      %v795 = vld [vmem:[%s5 + $0x58] sm:$0xff]
      %v796 = vld [vmem:[%s5 + $0x60] sm:$0xff]
      %v797 = vld [vmem:[%s5 + $0x68] sm:$0xff]
      %v798 = vld [vmem:[%s5 + $0x70] sm:$0xff]
      %v799 = vld [vmem:[%s5 + $0x78] sm:$0xff]
      %v800 = vld [vmem:[%s6] sm:$0x1]
      %v802 = vperm.slane %v800, 0
      %804 = vmatpush.msra.mxu0 %v799
      %805 = vmatpush.msra.mxu0 %v798
      %806 = vmatpush.msra.mxu0 %v797
      %807 = vmatpush.msra.mxu0 %v796
      %808 = vmatpush.msra.mxu0 %v795
      %809 = vmatpush.msra.mxu0 %v794
      %810 = vmatpush.msra.mxu0 %v793
      %811 = vmatpush.msra.mxu0 %v792
      %812 = vmatpush.msra.mxu0 %v791
      %813 = vmatpush.msra.mxu0 %v790
      %814 = vmatpush.msra.mxu0 %v789
      %815 = vmatpush.msra.mxu0 %v788
      %816 = vmatpush.msra.mxu0 %v787
      %817 = vmatpush.msra.mxu0 %v786
      %818 = vmatpush.msra.mxu0 %v785
      %819 = vmatpush.msra.mxu0 %v784
      %820 = vmatmul.f32.gmra.mxu0 %v752
      %v821 = vpop.f32.mrf.mxu0
      %v822 = vadd.f32 %v802, %v821
      %823 = vmatmul.f32.gmra.mxu0 %v753
      %v824 = vpop.f32.mrf.mxu0
      %v825 = vadd.f32 %v802, %v824
      %826 = vmatmul.f32.gmra.mxu0 %v754
      %v827 = vpop.f32.mrf.mxu0
      %v828 = vadd.f32 %v802, %v827
      %829 = vmatmul.f32.gmra.mxu0 %v755
      %v830 = vpop.f32.mrf.mxu0
      %v831 = vadd.f32 %v802, %v830
      %832 = vmatmul.f32.gmra.mxu0 %v756
      %v833 = vpop.f32.mrf.mxu0
      %v834 = vadd.f32 %v802, %v833
      %835 = vmatmul.f32.gmra.mxu0 %v757
      %v836 = vpop.f32.mrf.mxu0
      %v837 = vadd.f32 %v802, %v836
      %838 = vmatmul.f32.gmra.mxu0 %v758
      %v839 = vpop.f32.mrf.mxu0
      %v840 = vadd.f32 %v802, %v839
      %841 = vmatmul.f32.gmra.mxu0 %v759
      %v842 = vpop.f32.mrf.mxu0
      %v843 = vadd.f32 %v802, %v842
      %844 = vmatmul.f32.gmra.mxu0 %v760
      %v845 = vpop.f32.mrf.mxu0
      %v846 = vadd.f32 %v802, %v845
      %847 = vmatmul.f32.gmra.mxu0 %v761
      %v848 = vpop.f32.mrf.mxu0
      %v849 = vadd.f32 %v802, %v848
      %850 = vmatmul.f32.gmra.mxu0 %v762
      %v851 = vpop.f32.mrf.mxu0
      %v852 = vadd.f32 %v802, %v851
      %853 = vmatmul.f32.gmra.mxu0 %v763
      %v854 = vpop.f32.mrf.mxu0
      %v855 = vadd.f32 %v802, %v854
      %856 = vmatmul.f32.gmra.mxu0 %v764
      %v857 = vpop.f32.mrf.mxu0
      %v858 = vadd.f32 %v802, %v857
      %859 = vmatmul.f32.gmra.mxu0 %v765
      %v860 = vpop.f32.mrf.mxu0
      %v861 = vadd.f32 %v802, %v860
      %862 = vmatmul.f32.gmra.mxu0 %v766
      %v863 = vpop.f32.mrf.mxu0
      %v864 = vadd.f32 %v802, %v863
      %865 = vmatmul.f32.gmra.mxu0 %v767
      %v866 = vpop.f32.mrf.mxu0
      %v867 = vadd.f32 %v802, %v866
      %868 = vmatmul.f32.gmra.mxu0 %v768
      %v869 = vpop.f32.mrf.mxu0
      %v870 = vadd.f32 %v802, %v869
      %871 = vmatmul.f32.gmra.mxu0 %v769
      %v872 = vpop.f32.mrf.mxu0
      %v873 = vadd.f32 %v802, %v872
      %874 = vmatmul.f32.gmra.mxu0 %v770
      %v875 = vpop.f32.mrf.mxu0
      %v876 = vadd.f32 %v802, %v875
      %877 = vmatmul.f32.gmra.mxu0 %v771
      %v878 = vpop.f32.mrf.mxu0
      %v879 = vadd.f32 %v802, %v878
      %880 = vmatmul.f32.gmra.mxu0 %v772
      %v881 = vpop.f32.mrf.mxu0
      %v882 = vadd.f32 %v802, %v881
      %883 = vmatmul.f32.gmra.mxu0 %v773
      %v884 = vpop.f32.mrf.mxu0
      %v885 = vadd.f32 %v802, %v884
      %886 = vmatmul.f32.gmra.mxu0 %v774
      %v887 = vpop.f32.mrf.mxu0
      %v888 = vadd.f32 %v802, %v887
      %889 = vmatmul.f32.gmra.mxu0 %v775
      %v890 = vpop.f32.mrf.mxu0
      %v891 = vadd.f32 %v802, %v890
      %892 = vmatmul.f32.gmra.mxu0 %v776
      %v893 = vpop.f32.mrf.mxu0
      %v894 = vadd.f32 %v802, %v893
      %895 = vmatmul.f32.gmra.mxu0 %v777
      %v896 = vpop.f32.mrf.mxu0
      %v897 = vadd.f32 %v802, %v896
      %898 = vmatmul.f32.gmra.mxu0 %v778
      %v899 = vpop.f32.mrf.mxu0
      %v900 = vadd.f32 %v802, %v899
      %901 = vmatmul.f32.gmra.mxu0 %v779
      %v902 = vpop.f32.mrf.mxu0
      %v903 = vadd.f32 %v802, %v902
      %904 = vmatmul.f32.gmra.mxu0 %v780
      %v905 = vpop.f32.mrf.mxu0
      %v906 = vadd.f32 %v802, %v905
      %907 = vmatmul.f32.gmra.mxu0 %v781
      %v908 = vpop.f32.mrf.mxu0
      %v909 = vadd.f32 %v802, %v908
      %910 = vmatmul.f32.gmra.mxu0 %v782
      %v911 = vpop.f32.mrf.mxu0
      %v912 = vadd.f32 %v802, %v911
      %913 = vmatmul.f32.gmra.mxu0 %v783
      %v914 = vpop.f32.mrf.mxu0
      %v915 = vadd.f32 %v802, %v914
      %916 = vdwg.mxu0
      %v917 = vmax.f32 %v822, 0.0
      %v918 = vmax.f32 %v825, 0.0
      %v919 = vmax.f32 %v828, 0.0
      %v920 = vmax.f32 %v831, 0.0
      %v921 = vmax.f32 %v834, 0.0
      %v922 = vmax.f32 %v837, 0.0
      %v923 = vmax.f32 %v840, 0.0
      %v924 = vmax.f32 %v843, 0.0
      %v925 = vmax.f32 %v846, 0.0
      %v926 = vmax.f32 %v849, 0.0
      %v927 = vmax.f32 %v852, 0.0
      %v928 = vmax.f32 %v855, 0.0
      %v929 = vmax.f32 %v858, 0.0
      %v930 = vmax.f32 %v861, 0.0
      %v931 = vmax.f32 %v864, 0.0
      %v932 = vmax.f32 %v867, 0.0
      %v933 = vmax.f32 %v870, 0.0
      %v934 = vmax.f32 %v873, 0.0
      %v935 = vmax.f32 %v876, 0.0
      %v936 = vmax.f32 %v879, 0.0
      %v937 = vmax.f32 %v882, 0.0
      %v938 = vmax.f32 %v885, 0.0
      %v939 = vmax.f32 %v888, 0.0
      %v940 = vmax.f32 %v891, 0.0
      %v941 = vmax.f32 %v894, 0.0
      %v942 = vmax.f32 %v897, 0.0
      %v943 = vmax.f32 %v900, 0.0
      %v944 = vmax.f32 %v903, 0.0
      %v945 = vmax.f32 %v906, 0.0
      %v946 = vmax.f32 %v909, 0.0
      %v947 = vmax.f32 %v912, 0.0
      %v948 = vmax.f32 %v915, 0.0
      %v949 = vld [vmem:[%s7] sm:$0xff]
      %v950 = vld [vmem:[%s7 + $0x8] sm:$0xff]
      %v951 = vld [vmem:[%s7 + $0x10] sm:$0xff]
      %v952 = vld [vmem:[%s7 + $0x18] sm:$0xff]
      %v953 = vld [vmem:[%s7 + $0x20] sm:$0xff]
      %v954 = vld [vmem:[%s7 + $0x28] sm:$0xff]
      %v955 = vld [vmem:[%s7 + $0x30] sm:$0xff]
      %v956 = vld [vmem:[%s7 + $0x38] sm:$0xff]
      %v957 = vld [vmem:[%s8] sm:$0x1]
      %v959 = vperm.slane %v957, 0
      %vm961 = vcmask 523264
      %v963 = vsel %vm961, %v917, 0
      %v966 = vsel %vm961, %v918, 0
      %v969 = vsel %vm961, %v919, 0
      %v972 = vsel %vm961, %v920, 0
      %v975 = vsel %vm961, %v921, 0
      %v978 = vsel %vm961, %v922, 0
      %v981 = vsel %vm961, %v923, 0
      %v984 = vsel %vm961, %v924, 0
      %v987 = vsel %vm961, %v925, 0
      %v990 = vsel %vm961, %v926, 0
      %v993 = vsel %vm961, %v927, 0
      %v996 = vsel %vm961, %v928, 0
      %v999 = vsel %vm961, %v929, 0
      %v1002 = vsel %vm961, %v930, 0
      %v1005 = vsel %vm961, %v931, 0
      %v1008 = vsel %vm961, %v932, 0
      %v1011 = vsel %vm961, %v933, 0
      %v1014 = vsel %vm961, %v934, 0
      %v1017 = vsel %vm961, %v935, 0
      %v1020 = vsel %vm961, %v936, 0
      %v1023 = vsel %vm961, %v937, 0
      %v1026 = vsel %vm961, %v938, 0
      %v1029 = vsel %vm961, %v939, 0
      %v1032 = vsel %vm961, %v940, 0
      %v1035 = vsel %vm961, %v941, 0
      %v1038 = vsel %vm961, %v942, 0
      %v1041 = vsel %vm961, %v943, 0
      %v1044 = vsel %vm961, %v944, 0
      %v1047 = vsel %vm961, %v945, 0
      %v1050 = vsel %vm961, %v946, 0
      %v1053 = vsel %vm961, %v947, 0
      %v1056 = vsel %vm961, %v948, 0
      %1058 = vmatpush.msra.mxu0 0.0
      %1059 = vmatpush.msra.mxu0 0.0
      %1060 = vmatpush.msra.mxu0 0.0
      %1061 = vmatpush.msra.mxu0 0.0
      %1062 = vmatpush.msra.mxu0 0.0
      %1063 = vmatpush.msra.mxu0 0.0
      %1064 = vmatpush.msra.mxu0 0.0
      %1065 = vmatpush.msra.mxu0 0.0
      %1066 = vmatpush.msra.mxu0 %v956
      %1067 = vmatpush.msra.mxu0 %v955
      %1068 = vmatpush.msra.mxu0 %v954
      %1069 = vmatpush.msra.mxu0 %v953
      %1070 = vmatpush.msra.mxu0 %v952
      %1071 = vmatpush.msra.mxu0 %v951
      %1072 = vmatpush.msra.mxu0 %v950
      %1073 = vmatpush.msra.mxu0 %v949
      %1074 = vmatmul.f32.gmra.mxu0 %v963
      %v1075 = vpop.f32.mrf.mxu0
      %v1076 = vadd.f32 %v959, %v1075
      %1077 = vmatmul.f32.gmra.mxu0 %v966
      %v1078 = vpop.f32.mrf.mxu0
      %v1079 = vadd.f32 %v959, %v1078
      %1080 = vmatmul.f32.gmra.mxu0 %v969
      %v1081 = vpop.f32.mrf.mxu0
      %v1082 = vadd.f32 %v959, %v1081
      %1083 = vmatmul.f32.gmra.mxu0 %v972
      %v1084 = vpop.f32.mrf.mxu0
      %v1085 = vadd.f32 %v959, %v1084
      %1086 = vmatmul.f32.gmra.mxu0 %v975
      %v1087 = vpop.f32.mrf.mxu0
      %v1088 = vadd.f32 %v959, %v1087
      %1089 = vmatmul.f32.gmra.mxu0 %v978
      %v1090 = vpop.f32.mrf.mxu0
      %v1091 = vadd.f32 %v959, %v1090
      %1092 = vmatmul.f32.gmra.mxu0 %v981
      %v1093 = vpop.f32.mrf.mxu0
      %v1094 = vadd.f32 %v959, %v1093
      %1095 = vmatmul.f32.gmra.mxu0 %v984
      %v1096 = vpop.f32.mrf.mxu0
      %v1097 = vadd.f32 %v959, %v1096
      %1098 = vmatmul.f32.gmra.mxu0 %v987
      %v1099 = vpop.f32.mrf.mxu0
      %v1100 = vadd.f32 %v959, %v1099
      %1101 = vmatmul.f32.gmra.mxu0 %v990
      %v1102 = vpop.f32.mrf.mxu0
      %v1103 = vadd.f32 %v959, %v1102
      %1104 = vmatmul.f32.gmra.mxu0 %v993
      %v1105 = vpop.f32.mrf.mxu0
      %v1106 = vadd.f32 %v959, %v1105
      %1107 = vmatmul.f32.gmra.mxu0 %v996
      %v1108 = vpop.f32.mrf.mxu0
      %v1109 = vadd.f32 %v959, %v1108
      %1110 = vmatmul.f32.gmra.mxu0 %v999
      %v1111 = vpop.f32.mrf.mxu0
      %v1112 = vadd.f32 %v959, %v1111
      %1113 = vmatmul.f32.gmra.mxu0 %v1002
      %v1114 = vpop.f32.mrf.mxu0
      %v1115 = vadd.f32 %v959, %v1114
      %1116 = vmatmul.f32.gmra.mxu0 %v1005
      %v1117 = vpop.f32.mrf.mxu0
      %v1118 = vadd.f32 %v959, %v1117
      %1119 = vmatmul.f32.gmra.mxu0 %v1008
      %v1120 = vpop.f32.mrf.mxu0
      %v1121 = vadd.f32 %v959, %v1120
      %1122 = vmatmul.f32.gmra.mxu0 %v1011
      %v1123 = vpop.f32.mrf.mxu0
      %v1124 = vadd.f32 %v959, %v1123
      %1125 = vmatmul.f32.gmra.mxu0 %v1014
      %v1126 = vpop.f32.mrf.mxu0
      %v1127 = vadd.f32 %v959, %v1126
      %1128 = vmatmul.f32.gmra.mxu0 %v1017
      %v1129 = vpop.f32.mrf.mxu0
      %v1130 = vadd.f32 %v959, %v1129
      %1131 = vmatmul.f32.gmra.mxu0 %v1020
      %v1132 = vpop.f32.mrf.mxu0
      %v1133 = vadd.f32 %v959, %v1132
      %1134 = vmatmul.f32.gmra.mxu0 %v1023
      %v1135 = vpop.f32.mrf.mxu0
      %v1136 = vadd.f32 %v959, %v1135
      %1137 = vmatmul.f32.gmra.mxu0 %v1026
      %v1138 = vpop.f32.mrf.mxu0
      %v1139 = vadd.f32 %v959, %v1138
      %1140 = vmatmul.f32.gmra.mxu0 %v1029
      %v1141 = vpop.f32.mrf.mxu0
      %v1142 = vadd.f32 %v959, %v1141
      %1143 = vmatmul.f32.gmra.mxu0 %v1032
      %v1144 = vpop.f32.mrf.mxu0
      %v1145 = vadd.f32 %v959, %v1144
      %1146 = vmatmul.f32.gmra.mxu0 %v1035
      %v1147 = vpop.f32.mrf.mxu0
      %v1148 = vadd.f32 %v959, %v1147
      %1149 = vmatmul.f32.gmra.mxu0 %v1038
      %v1150 = vpop.f32.mrf.mxu0
      %v1151 = vadd.f32 %v959, %v1150
      %1152 = vmatmul.f32.gmra.mxu0 %v1041
      %v1153 = vpop.f32.mrf.mxu0
      %v1154 = vadd.f32 %v959, %v1153
      %1155 = vmatmul.f32.gmra.mxu0 %v1044
      %v1156 = vpop.f32.mrf.mxu0
      %v1157 = vadd.f32 %v959, %v1156
      %1158 = vmatmul.f32.gmra.mxu0 %v1047
      %v1159 = vpop.f32.mrf.mxu0
      %v1160 = vadd.f32 %v959, %v1159
      %1161 = vmatmul.f32.gmra.mxu0 %v1050
      %v1162 = vpop.f32.mrf.mxu0
      %v1163 = vadd.f32 %v959, %v1162
      %1164 = vmatmul.f32.gmra.mxu0 %v1053
      %v1165 = vpop.f32.mrf.mxu0
      %v1166 = vadd.f32 %v959, %v1165
      %1167 = vmatmul.f32.gmra.mxu0 %v1056
      %v1168 = vpop.f32.mrf.mxu0
      %v1169 = vadd.f32 %v959, %v1168
      %1170 = vdwg.mxu0
      %v1171 = vmax.f32 %v1076, 0.0
      %v1172 = vmax.f32 %v1079, 0.0
      %v1173 = vmax.f32 %v1082, 0.0
      %v1174 = vmax.f32 %v1085, 0.0
      %v1175 = vmax.f32 %v1088, 0.0
      %v1176 = vmax.f32 %v1091, 0.0
      %v1177 = vmax.f32 %v1094, 0.0
      %v1178 = vmax.f32 %v1097, 0.0
      %v1179 = vmax.f32 %v1100, 0.0
      %v1180 = vmax.f32 %v1103, 0.0
      %v1181 = vmax.f32 %v1106, 0.0
      %v1182 = vmax.f32 %v1109, 0.0
      %v1183 = vmax.f32 %v1112, 0.0
      %v1184 = vmax.f32 %v1115, 0.0
      %v1185 = vmax.f32 %v1118, 0.0
      %v1186 = vmax.f32 %v1121, 0.0
      %v1187 = vmax.f32 %v1124, 0.0
      %v1188 = vmax.f32 %v1127, 0.0
      %v1189 = vmax.f32 %v1130, 0.0
      %v1190 = vmax.f32 %v1133, 0.0
      %v1191 = vmax.f32 %v1136, 0.0
      %v1192 = vmax.f32 %v1139, 0.0
      %v1193 = vmax.f32 %v1142, 0.0
      %v1194 = vmax.f32 %v1145, 0.0
      %v1195 = vmax.f32 %v1148, 0.0
      %v1196 = vmax.f32 %v1151, 0.0
      %v1197 = vmax.f32 %v1154, 0.0
      %v1198 = vmax.f32 %v1157, 0.0
      %v1199 = vmax.f32 %v1160, 0.0
      %v1200 = vmax.f32 %v1163, 0.0
      %v1201 = vmax.f32 %v1166, 0.0
      %v1202 = vmax.f32 %v1169, 0.0
      %v1203 = vand.u32 2147483647, %v1076
      %v1204 = vand.u32 2147483647, %v1079
      %v1205 = vand.u32 2147483647, %v1082
      %v1206 = vand.u32 2147483647, %v1085
      %v1207 = vand.u32 2147483647, %v1088
      %v1208 = vand.u32 2147483647, %v1091
      %v1209 = vand.u32 2147483647, %v1094
      %v1210 = vand.u32 2147483647, %v1097
      %v1211 = vand.u32 2147483647, %v1100
      %v1212 = vand.u32 2147483647, %v1103
      %v1213 = vand.u32 2147483647, %v1106
      %v1214 = vand.u32 2147483647, %v1109
      %v1215 = vand.u32 2147483647, %v1112
      %v1216 = vand.u32 2147483647, %v1115
      %v1217 = vand.u32 2147483647, %v1118
      %v1218 = vand.u32 2147483647, %v1121
      %v1219 = vand.u32 2147483647, %v1124
      %v1220 = vand.u32 2147483647, %v1127
      %v1221 = vand.u32 2147483647, %v1130
      %v1222 = vand.u32 2147483647, %v1133
      %v1223 = vand.u32 2147483647, %v1136
      %v1224 = vand.u32 2147483647, %v1139
      %v1225 = vand.u32 2147483647, %v1142
      %v1226 = vand.u32 2147483647, %v1145
      %v1227 = vand.u32 2147483647, %v1148
      %v1228 = vand.u32 2147483647, %v1151
      %v1229 = vand.u32 2147483647, %v1154
      %v1230 = vand.u32 2147483647, %v1157
      %v1231 = vand.u32 2147483647, %v1160
      %v1232 = vand.u32 2147483647, %v1163
      %v1233 = vand.u32 2147483647, %v1166
      %v1234 = vand.u32 2147483647, %v1169
      %v1235 = vsub.f32 0.0, %v1203
      %v1236 = vsub.f32 0.0, %v1204
      %v1237 = vsub.f32 0.0, %v1205
      %v1238 = vsub.f32 0.0, %v1206
      %v1239 = vsub.f32 0.0, %v1207
      %v1240 = vsub.f32 0.0, %v1208
      %v1241 = vsub.f32 0.0, %v1209
      %v1242 = vsub.f32 0.0, %v1210
      %v1243 = vsub.f32 0.0, %v1211
      %v1244 = vsub.f32 0.0, %v1212
      %v1245 = vsub.f32 0.0, %v1213
      %v1246 = vsub.f32 0.0, %v1214
      %v1247 = vsub.f32 0.0, %v1215
      %v1248 = vsub.f32 0.0, %v1216
      %v1249 = vsub.f32 0.0, %v1217
      %v1250 = vsub.f32 0.0, %v1218
      %v1251 = vsub.f32 0.0, %v1219
      %v1252 = vsub.f32 0.0, %v1220
      %v1253 = vsub.f32 0.0, %v1221
      %v1254 = vsub.f32 0.0, %v1222
      %v1255 = vsub.f32 0.0, %v1223
      %v1256 = vsub.f32 0.0, %v1224
      %v1257 = vsub.f32 0.0, %v1225
      %v1258 = vsub.f32 0.0, %v1226
      %v1259 = vsub.f32 0.0, %v1227
      %v1260 = vsub.f32 0.0, %v1228
      %v1261 = vsub.f32 0.0, %v1229
      %v1262 = vsub.f32 0.0, %v1230
      %v1263 = vsub.f32 0.0, %v1231
      %v1264 = vsub.f32 0.0, %v1232
      %v1265 = vsub.f32 0.0, %v1233
      %v1266 = vsub.f32 0.0, %v1234
      %v1267 = vmul.f32 %v1235, 1.442695
      %v1268 = vpow.pop %v1267
      %v1269 = vmul.f32 %v1236, 1.442695
      %v1270 = vpow.pop %v1269
      %v1271 = vmul.f32 %v1237, 1.442695
      %v1272 = vpow.pop %v1271
      %v1273 = vmul.f32 %v1238, 1.442695
      %v1274 = vpow.pop %v1273
      %v1275 = vmul.f32 %v1239, 1.442695
      %v1276 = vpow.pop %v1275
      %v1277 = vmul.f32 %v1240, 1.442695
      %v1278 = vpow.pop %v1277
      %v1279 = vmul.f32 %v1241, 1.442695
      %v1280 = vpow.pop %v1279
      %v1281 = vmul.f32 %v1242, 1.442695
      %v1282 = vpow.pop %v1281
      %v1283 = vmul.f32 %v1243, 1.442695
      %v1284 = vpow.pop %v1283
      %v1285 = vmul.f32 %v1244, 1.442695
      %v1286 = vpow.pop %v1285
      %v1287 = vmul.f32 %v1245, 1.442695
      %v1288 = vpow.pop %v1287
      %v1289 = vmul.f32 %v1246, 1.442695
      %v1290 = vpow.pop %v1289
      %v1291 = vmul.f32 %v1247, 1.442695
      %v1292 = vpow.pop %v1291
      %v1293 = vmul.f32 %v1248, 1.442695
      %v1294 = vpow.pop %v1293
      %v1295 = vmul.f32 %v1249, 1.442695
      %v1296 = vpow.pop %v1295
      %v1297 = vmul.f32 %v1250, 1.442695
      %v1298 = vpow.pop %v1297
      %v1299 = vmul.f32 %v1251, 1.442695
      %v1300 = vpow.pop %v1299
      %v1301 = vmul.f32 %v1252, 1.442695
      %v1302 = vpow.pop %v1301
      %v1303 = vmul.f32 %v1253, 1.442695
      %v1304 = vpow.pop %v1303
      %v1305 = vmul.f32 %v1254, 1.442695
      %v1306 = vpow.pop %v1305
      %v1307 = vmul.f32 %v1255, 1.442695
      %v1308 = vpow.pop %v1307
      %v1309 = vmul.f32 %v1256, 1.442695
      %v1310 = vpow.pop %v1309
      %v1311 = vmul.f32 %v1257, 1.442695
      %v1312 = vpow.pop %v1311
      %v1313 = vmul.f32 %v1258, 1.442695
      %v1314 = vpow.pop %v1313
      %v1315 = vmul.f32 %v1259, 1.442695
      %v1316 = vpow.pop %v1315
      %v1317 = vmul.f32 %v1260, 1.442695
      %v1318 = vpow.pop %v1317
      %v1319 = vmul.f32 %v1261, 1.442695
      %v1320 = vpow.pop %v1319
      %v1321 = vmul.f32 %v1262, 1.442695
      %v1322 = vpow.pop %v1321
      %v1323 = vmul.f32 %v1263, 1.442695
      %v1324 = vpow.pop %v1323
      %v1325 = vmul.f32 %v1264, 1.442695
      %v1326 = vpow.pop %v1325
      %v1327 = vmul.f32 %v1265, 1.442695
      %v1328 = vpow.pop %v1327
      %v1329 = vmul.f32 %v1266, 1.442695
      %v1330 = vpow.pop %v1329
      %v1331 = vadd.f32 %v1268, 1.0
      %v1332 = vlog2.pop %v1331
      %v1333 = vmul.f32 %v1332, 0.6931472
      %v1334 = vmul.f32 -0.5, %v1268
      %v1335 = vadd.f32 %v1334, 1.0
      %v1336 = vmul.f32 %v1335, %v1268
      %v1337 = vand.u32 2147483647, %v1268
      %vm1338 = vcmp.lt.f32.partialorder %v1337, 0.0004427343
      %v1339 = vsel %vm1338, %v1336, %v1333
      %v1340 = vadd.f32 %v1270, 1.0
      %v1341 = vlog2.pop %v1340
      %v1342 = vmul.f32 %v1341, 0.6931472
      %v1343 = vmul.f32 -0.5, %v1270
      %v1344 = vadd.f32 %v1343, 1.0
      %v1345 = vmul.f32 %v1344, %v1270
      %v1346 = vand.u32 2147483647, %v1270
      %vm1347 = vcmp.lt.f32.partialorder %v1346, 0.0004427343
      %v1348 = vsel %vm1347, %v1345, %v1342
      %v1349 = vadd.f32 %v1272, 1.0
      %v1350 = vlog2.pop %v1349
      %v1351 = vmul.f32 %v1350, 0.6931472
      %v1352 = vmul.f32 -0.5, %v1272
      %v1353 = vadd.f32 %v1352, 1.0
      %v1354 = vmul.f32 %v1353, %v1272
      %v1355 = vand.u32 2147483647, %v1272
      %vm1356 = vcmp.lt.f32.partialorder %v1355, 0.0004427343
      %v1357 = vsel %vm1356, %v1354, %v1351
      %v1358 = vadd.f32 %v1274, 1.0
      %v1359 = vlog2.pop %v1358
      %v1360 = vmul.f32 %v1359, 0.6931472
      %v1361 = vmul.f32 -0.5, %v1274
      %v1362 = vadd.f32 %v1361, 1.0
      %v1363 = vmul.f32 %v1362, %v1274
      %v1364 = vand.u32 2147483647, %v1274
      %vm1365 = vcmp.lt.f32.partialorder %v1364, 0.0004427343
      %v1366 = vsel %vm1365, %v1363, %v1360
      %v1367 = vadd.f32 %v1276, 1.0
      %v1368 = vlog2.pop %v1367
      %v1369 = vmul.f32 %v1368, 0.6931472
      %v1370 = vmul.f32 -0.5, %v1276
      %v1371 = vadd.f32 %v1370, 1.0
      %v1372 = vmul.f32 %v1371, %v1276
      %v1373 = vand.u32 2147483647, %v1276
      %vm1374 = vcmp.lt.f32.partialorder %v1373, 0.0004427343
      %v1375 = vsel %vm1374, %v1372, %v1369
      %v1376 = vadd.f32 %v1278, 1.0
      %v1377 = vlog2.pop %v1376
      %v1378 = vmul.f32 %v1377, 0.6931472
      %v1379 = vmul.f32 -0.5, %v1278
      %v1380 = vadd.f32 %v1379, 1.0
      %v1381 = vmul.f32 %v1380, %v1278
      %v1382 = vand.u32 2147483647, %v1278
      %vm1383 = vcmp.lt.f32.partialorder %v1382, 0.0004427343
      %v1384 = vsel %vm1383, %v1381, %v1378
      %v1385 = vadd.f32 %v1280, 1.0
      %v1386 = vlog2.pop %v1385
      %v1387 = vmul.f32 %v1386, 0.6931472
      %v1388 = vmul.f32 -0.5, %v1280
      %v1389 = vadd.f32 %v1388, 1.0
      %v1390 = vmul.f32 %v1389, %v1280
      %v1391 = vand.u32 2147483647, %v1280
      %vm1392 = vcmp.lt.f32.partialorder %v1391, 0.0004427343
      %v1393 = vsel %vm1392, %v1390, %v1387
      %v1394 = vadd.f32 %v1282, 1.0
      %v1395 = vlog2.pop %v1394
      %v1396 = vmul.f32 %v1395, 0.6931472
      %v1397 = vmul.f32 -0.5, %v1282
      %v1398 = vadd.f32 %v1397, 1.0
      %v1399 = vmul.f32 %v1398, %v1282
      %v1400 = vand.u32 2147483647, %v1282
      %vm1401 = vcmp.lt.f32.partialorder %v1400, 0.0004427343
      %v1402 = vsel %vm1401, %v1399, %v1396
      %v1403 = vadd.f32 %v1284, 1.0
      %v1404 = vlog2.pop %v1403
      %v1405 = vmul.f32 %v1404, 0.6931472
      %v1406 = vmul.f32 -0.5, %v1284
      %v1407 = vadd.f32 %v1406, 1.0
      %v1408 = vmul.f32 %v1407, %v1284
      %v1409 = vand.u32 2147483647, %v1284
      %vm1410 = vcmp.lt.f32.partialorder %v1409, 0.0004427343
      %v1411 = vsel %vm1410, %v1408, %v1405
      %v1412 = vadd.f32 %v1286, 1.0
      %v1413 = vlog2.pop %v1412
      %v1414 = vmul.f32 %v1413, 0.6931472
      %v1415 = vmul.f32 -0.5, %v1286
      %v1416 = vadd.f32 %v1415, 1.0
      %v1417 = vmul.f32 %v1416, %v1286
      %v1418 = vand.u32 2147483647, %v1286
      %vm1419 = vcmp.lt.f32.partialorder %v1418, 0.0004427343
      %v1420 = vsel %vm1419, %v1417, %v1414
      %v1421 = vadd.f32 %v1288, 1.0
      %v1422 = vlog2.pop %v1421
      %v1423 = vmul.f32 %v1422, 0.6931472
      %v1424 = vmul.f32 -0.5, %v1288
      %v1425 = vadd.f32 %v1424, 1.0
      %v1426 = vmul.f32 %v1425, %v1288
      %v1427 = vand.u32 2147483647, %v1288
      %vm1428 = vcmp.lt.f32.partialorder %v1427, 0.0004427343
      %v1429 = vsel %vm1428, %v1426, %v1423
      %v1430 = vadd.f32 %v1290, 1.0
      %v1431 = vlog2.pop %v1430
      %v1432 = vmul.f32 %v1431, 0.6931472
      %v1433 = vmul.f32 -0.5, %v1290
      %v1434 = vadd.f32 %v1433, 1.0
      %v1435 = vmul.f32 %v1434, %v1290
      %v1436 = vand.u32 2147483647, %v1290
      %vm1437 = vcmp.lt.f32.partialorder %v1436, 0.0004427343
      %v1438 = vsel %vm1437, %v1435, %v1432
      %v1439 = vadd.f32 %v1292, 1.0
      %v1440 = vlog2.pop %v1439
      %v1441 = vmul.f32 %v1440, 0.6931472
      %v1442 = vmul.f32 -0.5, %v1292
      %v1443 = vadd.f32 %v1442, 1.0
      %v1444 = vmul.f32 %v1443, %v1292
      %v1445 = vand.u32 2147483647, %v1292
      %vm1446 = vcmp.lt.f32.partialorder %v1445, 0.0004427343
      %v1447 = vsel %vm1446, %v1444, %v1441
      %v1448 = vadd.f32 %v1294, 1.0
      %v1449 = vlog2.pop %v1448
      %v1450 = vmul.f32 %v1449, 0.6931472
      %v1451 = vmul.f32 -0.5, %v1294
      %v1452 = vadd.f32 %v1451, 1.0
      %v1453 = vmul.f32 %v1452, %v1294
      %v1454 = vand.u32 2147483647, %v1294
      %vm1455 = vcmp.lt.f32.partialorder %v1454, 0.0004427343
      %v1456 = vsel %vm1455, %v1453, %v1450
      %v1457 = vadd.f32 %v1296, 1.0
      %v1458 = vlog2.pop %v1457
      %v1459 = vmul.f32 %v1458, 0.6931472
      %v1460 = vmul.f32 -0.5, %v1296
      %v1461 = vadd.f32 %v1460, 1.0
      %v1462 = vmul.f32 %v1461, %v1296
      %v1463 = vand.u32 2147483647, %v1296
      %vm1464 = vcmp.lt.f32.partialorder %v1463, 0.0004427343
      %v1465 = vsel %vm1464, %v1462, %v1459
      %v1466 = vadd.f32 %v1298, 1.0
      %v1467 = vlog2.pop %v1466
      %v1468 = vmul.f32 %v1467, 0.6931472
      %v1469 = vmul.f32 -0.5, %v1298
      %v1470 = vadd.f32 %v1469, 1.0
      %v1471 = vmul.f32 %v1470, %v1298
      %v1472 = vand.u32 2147483647, %v1298
      %vm1473 = vcmp.lt.f32.partialorder %v1472, 0.0004427343
      %v1474 = vsel %vm1473, %v1471, %v1468
      %v1475 = vadd.f32 %v1300, 1.0
      %v1476 = vlog2.pop %v1475
      %v1477 = vmul.f32 %v1476, 0.6931472
      %v1478 = vmul.f32 -0.5, %v1300
      %v1479 = vadd.f32 %v1478, 1.0
      %v1480 = vmul.f32 %v1479, %v1300
      %v1481 = vand.u32 2147483647, %v1300
      %vm1482 = vcmp.lt.f32.partialorder %v1481, 0.0004427343
      %v1483 = vsel %vm1482, %v1480, %v1477
      %v1484 = vadd.f32 %v1302, 1.0
      %v1485 = vlog2.pop %v1484
      %v1486 = vmul.f32 %v1485, 0.6931472
      %v1487 = vmul.f32 -0.5, %v1302
      %v1488 = vadd.f32 %v1487, 1.0
      %v1489 = vmul.f32 %v1488, %v1302
      %v1490 = vand.u32 2147483647, %v1302
      %vm1491 = vcmp.lt.f32.partialorder %v1490, 0.0004427343
      %v1492 = vsel %vm1491, %v1489, %v1486
      %v1493 = vadd.f32 %v1304, 1.0
      %v1494 = vlog2.pop %v1493
      %v1495 = vmul.f32 %v1494, 0.6931472
      %v1496 = vmul.f32 -0.5, %v1304
      %v1497 = vadd.f32 %v1496, 1.0
      %v1498 = vmul.f32 %v1497, %v1304
      %v1499 = vand.u32 2147483647, %v1304
      %vm1500 = vcmp.lt.f32.partialorder %v1499, 0.0004427343
      %v1501 = vsel %vm1500, %v1498, %v1495
      %v1502 = vadd.f32 %v1306, 1.0
      %v1503 = vlog2.pop %v1502
      %v1504 = vmul.f32 %v1503, 0.6931472
      %v1505 = vmul.f32 -0.5, %v1306
      %v1506 = vadd.f32 %v1505, 1.0
      %v1507 = vmul.f32 %v1506, %v1306
      %v1508 = vand.u32 2147483647, %v1306
      %vm1509 = vcmp.lt.f32.partialorder %v1508, 0.0004427343
      %v1510 = vsel %vm1509, %v1507, %v1504
      %v1511 = vadd.f32 %v1308, 1.0
      %v1512 = vlog2.pop %v1511
      %v1513 = vmul.f32 %v1512, 0.6931472
      %v1514 = vmul.f32 -0.5, %v1308
      %v1515 = vadd.f32 %v1514, 1.0
      %v1516 = vmul.f32 %v1515, %v1308
      %v1517 = vand.u32 2147483647, %v1308
      %vm1518 = vcmp.lt.f32.partialorder %v1517, 0.0004427343
      %v1519 = vsel %vm1518, %v1516, %v1513
      %v1520 = vadd.f32 %v1310, 1.0
      %v1521 = vlog2.pop %v1520
      %v1522 = vmul.f32 %v1521, 0.6931472
      %v1523 = vmul.f32 -0.5, %v1310
      %v1524 = vadd.f32 %v1523, 1.0
      %v1525 = vmul.f32 %v1524, %v1310
      %v1526 = vand.u32 2147483647, %v1310
      %vm1527 = vcmp.lt.f32.partialorder %v1526, 0.0004427343
      %v1528 = vsel %vm1527, %v1525, %v1522
      %v1529 = vadd.f32 %v1312, 1.0
      %v1530 = vlog2.pop %v1529
      %v1531 = vmul.f32 %v1530, 0.6931472
      %v1532 = vmul.f32 -0.5, %v1312
      %v1533 = vadd.f32 %v1532, 1.0
      %v1534 = vmul.f32 %v1533, %v1312
      %v1535 = vand.u32 2147483647, %v1312
      %vm1536 = vcmp.lt.f32.partialorder %v1535, 0.0004427343
      %v1537 = vsel %vm1536, %v1534, %v1531
      %v1538 = vadd.f32 %v1314, 1.0
      %v1539 = vlog2.pop %v1538
      %v1540 = vmul.f32 %v1539, 0.6931472
      %v1541 = vmul.f32 -0.5, %v1314
      %v1542 = vadd.f32 %v1541, 1.0
      %v1543 = vmul.f32 %v1542, %v1314
      %v1544 = vand.u32 2147483647, %v1314
      %vm1545 = vcmp.lt.f32.partialorder %v1544, 0.0004427343
      %v1546 = vsel %vm1545, %v1543, %v1540
      %v1547 = vadd.f32 %v1316, 1.0
      %v1548 = vlog2.pop %v1547
      %v1549 = vmul.f32 %v1548, 0.6931472
      %v1550 = vmul.f32 -0.5, %v1316
      %v1551 = vadd.f32 %v1550, 1.0
      %v1552 = vmul.f32 %v1551, %v1316
      %v1553 = vand.u32 2147483647, %v1316
      %vm1554 = vcmp.lt.f32.partialorder %v1553, 0.0004427343
      %v1555 = vsel %vm1554, %v1552, %v1549
      %v1556 = vadd.f32 %v1318, 1.0
      %v1557 = vlog2.pop %v1556
      %v1558 = vmul.f32 %v1557, 0.6931472
      %v1559 = vmul.f32 -0.5, %v1318
      %v1560 = vadd.f32 %v1559, 1.0
      %v1561 = vmul.f32 %v1560, %v1318
      %v1562 = vand.u32 2147483647, %v1318
      %vm1563 = vcmp.lt.f32.partialorder %v1562, 0.0004427343
      %v1564 = vsel %vm1563, %v1561, %v1558
      %v1565 = vadd.f32 %v1320, 1.0
      %v1566 = vlog2.pop %v1565
      %v1567 = vmul.f32 %v1566, 0.6931472
      %v1568 = vmul.f32 -0.5, %v1320
      %v1569 = vadd.f32 %v1568, 1.0
      %v1570 = vmul.f32 %v1569, %v1320
      %v1571 = vand.u32 2147483647, %v1320
      %vm1572 = vcmp.lt.f32.partialorder %v1571, 0.0004427343
      %v1573 = vsel %vm1572, %v1570, %v1567
      %v1574 = vadd.f32 %v1322, 1.0
      %v1575 = vlog2.pop %v1574
      %v1576 = vmul.f32 %v1575, 0.6931472
      %v1577 = vmul.f32 -0.5, %v1322
      %v1578 = vadd.f32 %v1577, 1.0
      %v1579 = vmul.f32 %v1578, %v1322
      %v1580 = vand.u32 2147483647, %v1322
      %vm1581 = vcmp.lt.f32.partialorder %v1580, 0.0004427343
      %v1582 = vsel %vm1581, %v1579, %v1576
      %v1583 = vadd.f32 %v1324, 1.0
      %v1584 = vlog2.pop %v1583
      %v1585 = vmul.f32 %v1584, 0.6931472
      %v1586 = vmul.f32 -0.5, %v1324
      %v1587 = vadd.f32 %v1586, 1.0
      %v1588 = vmul.f32 %v1587, %v1324
      %v1589 = vand.u32 2147483647, %v1324
      %vm1590 = vcmp.lt.f32.partialorder %v1589, 0.0004427343
      %v1591 = vsel %vm1590, %v1588, %v1585
      %v1592 = vadd.f32 %v1326, 1.0
      %v1593 = vlog2.pop %v1592
      %v1594 = vmul.f32 %v1593, 0.6931472
      %v1595 = vmul.f32 -0.5, %v1326
      %v1596 = vadd.f32 %v1595, 1.0
      %v1597 = vmul.f32 %v1596, %v1326
      %v1598 = vand.u32 2147483647, %v1326
      %vm1599 = vcmp.lt.f32.partialorder %v1598, 0.0004427343
      %v1600 = vsel %vm1599, %v1597, %v1594
      %v1601 = vadd.f32 %v1328, 1.0
      %v1602 = vlog2.pop %v1601
      %v1603 = vmul.f32 %v1602, 0.6931472
      %v1604 = vmul.f32 -0.5, %v1328
      %v1605 = vadd.f32 %v1604, 1.0
      %v1606 = vmul.f32 %v1605, %v1328
      %v1607 = vand.u32 2147483647, %v1328
      %vm1608 = vcmp.lt.f32.partialorder %v1607, 0.0004427343
      %v1609 = vsel %vm1608, %v1606, %v1603
      %v1610 = vadd.f32 %v1330, 1.0
      %v1611 = vlog2.pop %v1610
      %v1612 = vmul.f32 %v1611, 0.6931472
      %v1613 = vmul.f32 -0.5, %v1330
      %v1614 = vadd.f32 %v1613, 1.0
      %v1615 = vmul.f32 %v1614, %v1330
      %v1616 = vand.u32 2147483647, %v1330
      %vm1617 = vcmp.lt.f32.partialorder %v1616, 0.0004427343
      %v1618 = vsel %vm1617, %v1615, %v1612
      %v1619 = vadd.f32 %v1171, %v1339
      %v1620 = vadd.f32 %v1172, %v1348
      %v1621 = vadd.f32 %v1173, %v1357
      %v1622 = vadd.f32 %v1174, %v1366
      %v1623 = vadd.f32 %v1175, %v1375
      %v1624 = vadd.f32 %v1176, %v1384
      %v1625 = vadd.f32 %v1177, %v1393
      %v1626 = vadd.f32 %v1178, %v1402
      %v1627 = vadd.f32 %v1179, %v1411
      %v1628 = vadd.f32 %v1180, %v1420
      %v1629 = vadd.f32 %v1181, %v1429
      %v1630 = vadd.f32 %v1182, %v1438
      %v1631 = vadd.f32 %v1183, %v1447
      %v1632 = vadd.f32 %v1184, %v1456
      %v1633 = vadd.f32 %v1185, %v1465
      %v1634 = vadd.f32 %v1186, %v1474
      %v1635 = vadd.f32 %v1187, %v1483
      %v1636 = vadd.f32 %v1188, %v1492
      %v1637 = vadd.f32 %v1189, %v1501
      %v1638 = vadd.f32 %v1190, %v1510
      %v1639 = vadd.f32 %v1191, %v1519
      %v1640 = vadd.f32 %v1192, %v1528
      %v1641 = vadd.f32 %v1193, %v1537
      %v1642 = vadd.f32 %v1194, %v1546
      %v1643 = vadd.f32 %v1195, %v1555
      %v1644 = vadd.f32 %v1196, %v1564
      %v1645 = vadd.f32 %v1197, %v1573
      %v1646 = vadd.f32 %v1198, %v1582
      %v1647 = vadd.f32 %v1199, %v1591
      %v1648 = vadd.f32 %v1200, %v1600
      %v1649 = vadd.f32 %v1201, %v1609
      %v1650 = vadd.f32 %v1202, %v1618
      %v1651 = vlaneseq
      %v1652 = vand.u32 %v1651, 127
      %vm1653 = vcmp.eq.s32.totalorder %v1652, 0
      %v1654 = vsel %vm1653, %v1076, %v1619
      %v1655 = vsel %vm1653, %v1079, %v1620
      %v1656 = vsel %vm1653, %v1082, %v1621
      %v1657 = vsel %vm1653, %v1085, %v1622
      %v1658 = vsel %vm1653, %v1088, %v1623
      %v1659 = vsel %vm1653, %v1091, %v1624
      %v1660 = vsel %vm1653, %v1094, %v1625
      %v1661 = vsel %vm1653, %v1097, %v1626
      %v1662 = vsel %vm1653, %v1100, %v1627
      %v1663 = vsel %vm1653, %v1103, %v1628
      %v1664 = vsel %vm1653, %v1106, %v1629
      %v1665 = vsel %vm1653, %v1109, %v1630
      %v1666 = vsel %vm1653, %v1112, %v1631
      %v1667 = vsel %vm1653, %v1115, %v1632
      %v1668 = vsel %vm1653, %v1118, %v1633
      %v1669 = vsel %vm1653, %v1121, %v1634
      %v1670 = vsel %vm1653, %v1124, %v1635
      %v1671 = vsel %vm1653, %v1127, %v1636
      %v1672 = vsel %vm1653, %v1130, %v1637
      %v1673 = vsel %vm1653, %v1133, %v1638
      %v1674 = vsel %vm1653, %v1136, %v1639
      %v1675 = vsel %vm1653, %v1139, %v1640
      %v1676 = vsel %vm1653, %v1142, %v1641
      %v1677 = vsel %vm1653, %v1145, %v1642
      %v1678 = vsel %vm1653, %v1148, %v1643
      %v1679 = vsel %vm1653, %v1151, %v1644
      %v1680 = vsel %vm1653, %v1154, %v1645
      %v1681 = vsel %vm1653, %v1157, %v1646
      %v1682 = vsel %vm1653, %v1160, %v1647
      %v1683 = vsel %vm1653, %v1163, %v1648
      %v1684 = vsel %vm1653, %v1166, %v1649
      %v1685 = vsel %vm1653, %v1169, %v1650
      %vm1686 = vcmask 15360
      %1687 = vst.msk [vmem:[%s334] sm:$0xff] %vm1686, %v1654
      %1688 = vst.msk [vmem:[%s334 + $0x8] sm:$0xff] %vm1686, %v1655
      %1689 = vst.msk [vmem:[%s334 + $0x10] sm:$0xff] %vm1686, %v1656
      %1690 = vst.msk [vmem:[%s334 + $0x18] sm:$0xff] %vm1686, %v1657
      %1691 = vst.msk [vmem:[%s334 + $0x20] sm:$0xff] %vm1686, %v1658
      %1692 = vst.msk [vmem:[%s334 + $0x28] sm:$0xff] %vm1686, %v1659
      %1693 = vst.msk [vmem:[%s334 + $0x30] sm:$0xff] %vm1686, %v1660
      %1694 = vst.msk [vmem:[%s334 + $0x38] sm:$0xff] %vm1686, %v1661
      %1695 = vst.msk [vmem:[%s334 + $0x40] sm:$0xff] %vm1686, %v1662
      %1696 = vst.msk [vmem:[%s334 + $0x48] sm:$0xff] %vm1686, %v1663
      %1697 = vst.msk [vmem:[%s334 + $0x50] sm:$0xff] %vm1686, %v1664
      %1698 = vst.msk [vmem:[%s334 + $0x58] sm:$0xff] %vm1686, %v1665
      %1699 = vst.msk [vmem:[%s334 + $0x60] sm:$0xff] %vm1686, %v1666
      %1700 = vst.msk [vmem:[%s334 + $0x68] sm:$0xff] %vm1686, %v1667
      %1701 = vst.msk [vmem:[%s334 + $0x70] sm:$0xff] %vm1686, %v1668
      %1702 = vst.msk [vmem:[%s334 + $0x78] sm:$0xff] %vm1686, %v1669
      %1703 = vst.msk [vmem:[%s334 + $0x80] sm:$0xff] %vm1686, %v1670
      %1704 = vst.msk [vmem:[%s334 + $0x88] sm:$0xff] %vm1686, %v1671
      %1705 = vst.msk [vmem:[%s334 + $0x90] sm:$0xff] %vm1686, %v1672
      %1706 = vst.msk [vmem:[%s334 + $0x98] sm:$0xff] %vm1686, %v1673
      %1707 = vst.msk [vmem:[%s334 + $0xa0] sm:$0xff] %vm1686, %v1674
      %1708 = vst.msk [vmem:[%s334 + $0xa8] sm:$0xff] %vm1686, %v1675
      %1709 = vst.msk [vmem:[%s334 + $0xb0] sm:$0xff] %vm1686, %v1676
      %1710 = vst.msk [vmem:[%s334 + $0xb8] sm:$0xff] %vm1686, %v1677
      %1711 = vst.msk [vmem:[%s334 + $0xc0] sm:$0xff] %vm1686, %v1678
      %1712 = vst.msk [vmem:[%s334 + $0xc8] sm:$0xff] %vm1686, %v1679
      %1713 = vst.msk [vmem:[%s334 + $0xd0] sm:$0xff] %vm1686, %v1680
      %1714 = vst.msk [vmem:[%s334 + $0xd8] sm:$0xff] %vm1686, %v1681
      %1715 = vst.msk [vmem:[%s334 + $0xe0] sm:$0xff] %vm1686, %v1682
      %1716 = vst.msk [vmem:[%s334 + $0xe8] sm:$0xff] %vm1686, %v1683
      %1717 = vst.msk [vmem:[%s334 + $0xf0] sm:$0xff] %vm1686, %v1684
      %1718 = vst.msk [vmem:[%s334 + $0xf8] sm:$0xff] %vm1686, %v1685
      %s1719 = smul.u32 32, %s20
      %p1720 = scmp.lt.s32.totalorder %s1719, 63
      %s1721 = scalar_select %p1720, %s1719, 63
      %s1722 = smul.addr %s1721, 8
      %s1723 = scalar_lea.vmem %s9, %s1722
      // Predicated region
      $region57: #{tpu_custom_call.1} parent=55 // pred_check
        %p1724 = pneg %p232
      $region58: #{tpu_custom_call.1} parent=55 // pred_check_branch
        %1726 = sbr.rel (%p1724) target = $region60
      $region59: #{tpu_custom_call.1} parent=55 // pred_region
        %s1727 = smul.u32 32, %s20
      $region60: #{tpu_custom_call.1} parent=55 // pred_fallthru
        _
    $region56: #{tpu_custom_call.1} parent=5 // pred_fallthru
      _
    %p1728 = scmp.le.s32.totalorder 2, %s15
    // Predicated region
    $region61: #{tpu_custom_call.1} parent=5 // pred_check
      %p1729 = pneg %p1728
    $region62: #{tpu_custom_call.1} parent=5 // pred_check_branch
      %1731 = sbr.rel (%p1729) target = $region64
    $region63: #{tpu_custom_call.1} parent=5 // pred_region
      %s1732 = ssub.s32 %s15, 2
      // Predicated region
      $region65: #{tpu_custom_call.1} parent=63 // pred_check
        %p1733 = pneg %p238
      $region66: #{tpu_custom_call.1} parent=63 // pred_check_branch
        %1735 = sbr.rel (%p1733) target = $region68
      $region67: #{tpu_custom_call.1} parent=63 // pred_region
        %s1736 = smul.u32 32, %s21
        %p1737 = scmp.lt.s32.totalorder %s1736, 63
        %s1738 = scalar_select %p1737, %s1736, 63
        %s1739 = smul.addr %s1738, 8
        %s1740 = scalar_lea.vmem %s9, %s1739
      $region68: #{tpu_custom_call.1} parent=63 // pred_fallthru
        _
    $region64: #{tpu_custom_call.1} parent=5 // pred_fallthru
      _
  $region6: #{tpu_custom_call.1} parent=0 // loop_footer
    %s19 = sadd.s32 1, %s15
  $region7: #{tpu_custom_call.1} parent=0 // loop_footer_branch
    %14 = sbr.rel target = $region3
  $region8: #{tpu_custom_call.1} parent=0 // loop_exit
    _

</llo_original>
